<compile_context>
chip_gen: v7x
topology: tpu7x:2x2x1
jax: 0.10.0
libtpu: 0.0.40
codegen_flags: <defaults>
</compile_context>

<pallas_src>
import functools

import jax
import jax.numpy as jnp
from jax.experimental import pallas as pl
from jax.experimental.pallas import tpu as pltpu


def _mhsa_flash_kernel(xq_ref, xkv_ref, wq_ref, bq_ref, wkv_ref, bkv_ref,
                       wo_ref, bo_ref, out_ref,
                       q_scr, m_scr, l_scr, acc_scr,
                       *, head, d_head, matmul_dtype, single_kv_tile):
    """One grid step = (batch b, q-tile qi, kv-tile ki). kv axis is the reduction axis."""
    ki = pl.program_id(2)
    nk = pl.num_programs(2)
    f = head * d_head

    def project_q():
        # (tq, f) @ (f, f); the 1/sqrt(f) score scale is pre-folded into wq/bq.
        q = jnp.dot(xq_ref[...], wq_ref[...],
                    preferred_element_type=jnp.float32) + bq_ref[...]
        tq = q.shape[0]
        return q.reshape(tq, head, d_head).transpose(1, 0, 2)       # (head, tq, d_head) f32

    def project_kv():
        # fused k|v projection: (tk, f) @ (f, 2f)
        kv = jnp.dot(xkv_ref[...], wkv_ref[...],
                     preferred_element_type=jnp.float32) + bkv_ref[...]
        tk = kv.shape[0]
        k = kv[:, :f].reshape(tk, head, d_head).transpose(1, 0, 2)  # (head, tk, d_head)
        v = kv[:, f:].reshape(tk, head, d_head).transpose(1, 0, 2)
        return k.astype(matmul_dtype), v.astype(matmul_dtype)

    def scores(q, k):
        return jnp.einsum('hqd,hkd->hqk', q.astype(matmul_dtype), k,
                          preferred_element_type=jnp.float32)        # (head, tq, tk) f32

    def write_out(attn_f32):
        # attn_f32: (head, tq, d_head) -> merge heads, output projection, store.
        tq = attn_f32.shape[1]
        merged = attn_f32.transpose(1, 0, 2).reshape(tq, f)
        o = jnp.dot(merged.astype(matmul_dtype), wo_ref[...],
                    preferred_element_type=jnp.float32) + bo_ref[...]
        # TODO(synk): for f < 128 this is a masked partial store; pad f to a multiple of
        # 128 at the wrapper for lane-dense writes on realistic feature sizes.
        out_ref[...] = o.astype(out_ref.dtype)

    if single_kv_tile:
        # Whole kv range in one tile: plain softmax, no online-update state / scratch traffic.
        q = project_q()
        k, v = project_kv()
        s = scores(q, k)
        m = jnp.max(s, axis=-1, keepdims=True)
        p = jnp.exp(s - m)
        l = jnp.sum(p, axis=-1, keepdims=True)
        attn = jnp.einsum('hqk,hkd->hqd', p.astype(matmul_dtype), v,
                          preferred_element_type=jnp.float32)
        write_out(attn * pl.reciprocal(l, approx=True))
        return

    # ---- generic flash path: online softmax across kv tiles ----
    @pl.when(ki == 0)
    def _init():
        q_scr[...] = project_q().astype(q_scr.dtype)
        m_scr[...] = jnp.full(m_scr.shape, -jnp.inf, jnp.float32)
        l_scr[...] = jnp.zeros(l_scr.shape, jnp.float32)
        acc_scr[...] = jnp.zeros(acc_scr.shape, jnp.float32)

    k, v = project_kv()
    s = scores(q_scr[...], k)

    m_prev = m_scr[...]
    m_new = jnp.maximum(m_prev, jnp.max(s, axis=-1, keepdims=True))
    alpha = jnp.exp(m_prev - m_new)
    p = jnp.exp(s - m_new)
    l_scr[...] = alpha * l_scr[...] + jnp.sum(p, axis=-1, keepdims=True)
    acc_scr[...] = alpha * acc_scr[...] + jnp.einsum(
        'hqk,hkd->hqd', p.astype(matmul_dtype), v,
        preferred_element_type=jnp.float32)
    m_scr[...] = m_new

    @pl.when(ki == nk - 1)
    def _finalize():
        write_out(acc_scr[...] * pl.reciprocal(l_scr[...], approx=True))


def mhsa_forward(x, params, *, head, matmul_dtype=jnp.float32, tq=None, tk=None):
    """x: (b, n, f).  params: weights stored (in, out), biases (1, out)."""
    b, n, f = x.shape
    d_head = f // head
    scale = 1.0 / (f ** 0.5)   # PyTorch module scales by sqrt(feats), not sqrt(d_head)

    # Seq tiles: multiples of 8/128 when possible, else full seq (BlockSpec constraint).
    if tq is None:
        tq = 128 if (n % 128 == 0) else n
    if tk is None:
        tk = 128 if (n % 128 == 0) else n
    assert n % tq == 0 and n % tk == 0
    n_q, n_k = n // tq, n // tk
    single_kv_tile = (n_k == 1)

    # Fold the score scale into the q projection; fuse k|v weights.
    wq = (params["wq"] * scale).astype(matmul_dtype)
    bq = params["bq"] * scale
    wkv = jnp.concatenate([params["wk"], params["wv"]], axis=1).astype(matmul_dtype)
    bkv = jnp.concatenate([params["bk"], params["bv"]], axis=1)
    wo = params["wo"].astype(matmul_dtype)
    bo = params["bo"]
    x_in = x.astype(matmul_dtype)   # halves DMA bytes in bf16 mode

    kernel = functools.partial(_mhsa_flash_kernel, head=head, d_head=d_head,
                               matmul_dtype=matmul_dtype,
                               single_kv_tile=single_kv_tile)

    grid = (b, n_q, n_k)
    const2 = lambda bi, qi, ki: (0, 0)

    # VMEM budget estimate with headroom; keep below v7x's 64 MiB/TC.
    isz = jnp.dtype(matmul_dtype).itemsize
    wbytes = (wq.size + wkv.size + wo.size) * isz + (bq.size + bkv.size + bo.size) * 4
    abytes = (tq * f + tk * f) * isz + tq * f * 4
    sbytes = head * tq * d_head * isz + (head * tq * d_head + 2 * head * tq) * 4
    vmem_limit = int(min(max(4 * (wbytes + 2 * abytes + sbytes), 32 << 20), 48 << 20))

    # Advisory cost hint for XLA scheduling around the custom call.
    cost = pl.CostEstimate(
        flops=int(8 * b * n * f * f + 4 * b * n * n * f),
        transcendentals=int(b * head * n * n),
        bytes_accessed=int(2 * x.size * isz + wbytes + x.size * x.dtype.itemsize))

    return pl.pallas_call(
        kernel,
        out_shape=jax.ShapeDtypeStruct((b, n, f), x.dtype),
        grid_spec=pltpu.PrefetchScalarGridSpec(
            num_scalar_prefetch=0,
            grid=grid,
            in_specs=[
                pl.BlockSpec((pl.Squeezed(), tq, f), lambda bi, qi, ki: (bi, qi, 0)),  # x (q rows)
                pl.BlockSpec((pl.Squeezed(), tk, f), lambda bi, qi, ki: (bi, ki, 0)),  # x (kv rows)
                pl.BlockSpec((f, f), const2),      # wq  (pre-scaled)
                pl.BlockSpec((1, f), const2),      # bq  (pre-scaled)
                pl.BlockSpec((f, 2 * f), const2),  # wk|wv fused
                pl.BlockSpec((1, 2 * f), const2),  # bk|bv fused
                pl.BlockSpec((f, f), const2),      # wo
                pl.BlockSpec((1, f), const2),      # bo
            ],
            out_specs=pl.BlockSpec((pl.Squeezed(), tq, f), lambda bi, qi, ki: (bi, qi, 0)),
            scratch_shapes=[
                pltpu.VMEM((head, tq, d_head), matmul_dtype),  # q (heads split, pre-scaled)
                pltpu.VMEM((head, tq, 1), jnp.float32),        # running max m
                pltpu.VMEM((head, tq, 1), jnp.float32),        # running denom l
                pltpu.VMEM((head, tq, d_head), jnp.float32),   # output accumulator
            ],
        ),
        compiler_params=pltpu.CompilerParams(
            dimension_semantics=("parallel", "parallel", "arbitrary"),
            vmem_limit_bytes=vmem_limit),
        cost_estimate=cost,
    )(x_in, x_in, wq, bq, wkv, bkv, wo, bo)


def _reference(x, params, head):
    """Pure-JAX f32 reference mirroring the PyTorch forward."""
    b, n, f = x.shape
    d_head = f // head

    def lin(y, w, bias):
        return y @ w + bias  # w is (in, out), bias (1, out)

    q = lin(x, params["wq"], params["bq"]).reshape(b, n, head, d_head).transpose(0, 2, 1, 3)
    k = lin(x, params["wk"], params["bk"]).reshape(b, n, head, d_head).transpose(0, 2, 1, 3)
    v = lin(x, params["wv"], params["bv"]).reshape(b, n, head, d_head).transpose(0, 2, 1, 3)
    score = jax.nn.softmax(jnp.einsum('bhif,bhjf->bhij', q, k) / (f ** 0.5), axis=-1)
    attn = jnp.einsum('bhij,bhjf->bhif', score, v)
    attn = attn.transpose(0, 2, 1, 3).reshape(b, n, f)
    return lin(attn, params["wo"], params["bo"])


if __name__ == "__main__":
    # small shapes consistent with the module: batch=2, seq=8, feats=32, head=8 (d_head=4)
    b, n, f, head = 2, 8, 32, 8

    key = jax.random.PRNGKey(0)
    keys = jax.random.split(key, 10)
    bound = 1.0 / (f ** 0.5)   # PyTorch nn.Linear default init range

    def uw(k):  # weight stored (in, out)
        return jax.random.uniform(k, (f, f), jnp.float32, -bound, bound)

    def ub(k):
        return jax.random.uniform(k, (1, f), jnp.float32, -bound, bound)

    params = {
        "wq": uw(keys[0]), "bq": ub(keys[1]),
        "wk": uw(keys[2]), "bk": ub(keys[3]),
        "wv": uw(keys[4]), "bv": ub(keys[5]),
        "wo": uw(keys[6]), "bo": ub(keys[7]),
    }

    # --- main shape: single kv tile fast path, f32 matmul inputs ---
    x = jax.random.normal(keys[8], (b, n, f), jnp.float32)
    ref = _reference(x, params, head)
    out = jax.block_until_ready(mhsa_forward(x, params, head=head))
    assert out.shape == (b, n, f)
    err = float(jnp.max(jnp.abs(out - ref)))
    assert jnp.allclose(out, ref, atol=2e-3, rtol=2e-3), f"f32 fast path mismatch, max err {err}"

    # --- bf16 matmul-input path (rated MXU throughput); accumulation stays f32 ---
    out_bf16 = jax.block_until_ready(
        mhsa_forward(x, params, head=head, matmul_dtype=jnp.bfloat16))
    assert jnp.allclose(out_bf16, ref, atol=5e-2, rtol=5e-2), "bf16 path mismatch"

    # --- longer sequence with small tiles: exercises the multi-kv-tile online-softmax path ---
    n2 = 16
    x2 = jax.random.normal(keys[9], (b, n2, f), jnp.float32)
    ref2 = _reference(x2, params, head)
    out2 = jax.block_until_ready(mhsa_forward(x2, params, head=head, tq=8, tk=8))
    err2 = float(jnp.max(jnp.abs(out2 - ref2)))
    assert jnp.allclose(out2, ref2, atol=2e-3, rtol=2e-3), f"flash path mismatch, max err {err2}"

    print("KERNEL_OK")
</pallas_src>

<mosaic_0001>
module attributes {stable_mosaic.version = 11 : i64} {
  func.func @_mhsa_flash_kernel(%arg0: i32, %arg1: i32, %arg2: i32, %arg3: memref<1x8x32xf32, #tpu.memory_space<vmem>>, %arg4: memref<1x8x32xf32, #tpu.memory_space<vmem>>, %arg5: memref<32x32xf32, #tpu.memory_space<vmem>>, %arg6: memref<1x32xf32, #tpu.memory_space<vmem>>, %arg7: memref<32x64xf32, #tpu.memory_space<vmem>>, %arg8: memref<1x64xf32, #tpu.memory_space<vmem>>, %arg9: memref<32x32xf32, #tpu.memory_space<vmem>>, %arg10: memref<1x32xf32, #tpu.memory_space<vmem>>, %arg11: memref<1x8x32xf32, #tpu.memory_space<vmem>>, %arg12: memref<8x8x4xf32, #tpu.memory_space<vmem>>, %arg13: memref<8x8x1xf32, #tpu.memory_space<vmem>>, %arg14: memref<8x8x1xf32, #tpu.memory_space<vmem>>, %arg15: memref<8x8x4xf32, #tpu.memory_space<vmem>>) attributes {dimension_semantics = [#tpu.dimension_semantics<parallel>, #tpu.dimension_semantics<parallel>, #tpu.dimension_semantics<arbitrary>], iteration_bounds = array<i64: 2, 1, 1>, scalar_prefetch = 0 : i64, scratch_operands = 4 : i64, tpu.core_type = #tpu.core_type<tc>, window_params = [{transform_indices = @transform_0, window_bounds = array<i64: 1, 8, 32>}, {transform_indices = @transform_1, window_bounds = array<i64: 1, 8, 32>}, {pipeline_mode = #tpu.pipeline_mode<synchronous>, transform_indices = @transform_2, window_bounds = array<i64: 32, 32>}, {pipeline_mode = #tpu.pipeline_mode<synchronous>, transform_indices = @transform_3, window_bounds = array<i64: 1, 32>}, {pipeline_mode = #tpu.pipeline_mode<synchronous>, transform_indices = @transform_4, window_bounds = array<i64: 32, 64>}, {pipeline_mode = #tpu.pipeline_mode<synchronous>, transform_indices = @transform_5, window_bounds = array<i64: 1, 64>}, {pipeline_mode = #tpu.pipeline_mode<synchronous>, transform_indices = @transform_6, window_bounds = array<i64: 32, 32>}, {pipeline_mode = #tpu.pipeline_mode<synchronous>, transform_indices = @transform_7, window_bounds = array<i64: 1, 32>}, {transform_indices = @transform_8, window_bounds = array<i64: 1, 8, 32>}]} {
    %c0 = arith.constant 0 : index
    %c0_0 = arith.constant 0 : index
    %c0_1 = arith.constant 0 : index
    %0 = vector.load %arg3[%c0, %c0_0, %c0_1] : memref<1x8x32xf32, #tpu.memory_space<vmem>>, vector<1x8x32xf32>
    %1 = vector.shape_cast %0 : vector<1x8x32xf32> to vector<8x32xf32>
    %c0_2 = arith.constant 0 : index
    %c0_3 = arith.constant 0 : index
    %2 = vector.load %arg5[%c0_2, %c0_3] : memref<32x32xf32, #tpu.memory_space<vmem>>, vector<32x32xf32>
    %cst = arith.constant dense<0.000000e+00> : vector<8x32xf32>
    %3 = tpu.matmul %1, %2, %cst {dimension_numbers = #tpu.dot_dimension_numbers<[1], [0], [0], [1], [0, 0, 1, 1], [], []>} : vector<8x32xf32>, vector<32x32xf32>, vector<8x32xf32> -> vector<8x32xf32>
    %c0_4 = arith.constant 0 : index
    %c0_5 = arith.constant 0 : index
    %4 = vector.load %arg6[%c0_4, %c0_5] : memref<1x32xf32, #tpu.memory_space<vmem>>, vector<1x32xf32>
    %5 = vector.broadcast %4 : vector<1x32xf32> to vector<8x32xf32>
    %6 = arith.addf %3, %5 : vector<8x32xf32>
    %7 = vector.shape_cast %6 : vector<8x32xf32> to vector<8x8x4xf32>
    %8 = tpu.transpose %7, [1, 0, 2] : vector<8x8x4xf32> -> vector<8x8x4xf32>
    %c0_6 = arith.constant 0 : index
    %c0_7 = arith.constant 0 : index
    %c0_8 = arith.constant 0 : index
    %9 = vector.load %arg4[%c0_6, %c0_7, %c0_8] : memref<1x8x32xf32, #tpu.memory_space<vmem>>, vector<1x8x32xf32>
    %10 = vector.shape_cast %9 : vector<1x8x32xf32> to vector<8x32xf32>
    %c0_9 = arith.constant 0 : index
    %c0_10 = arith.constant 0 : index
    %11 = vector.load %arg7[%c0_9, %c0_10] : memref<32x64xf32, #tpu.memory_space<vmem>>, vector<32x64xf32>
    %cst_11 = arith.constant dense<0.000000e+00> : vector<8x64xf32>
    %12 = tpu.matmul %10, %11, %cst_11 {dimension_numbers = #tpu.dot_dimension_numbers<[1], [0], [0], [1], [0, 0, 1, 1], [], []>} : vector<8x32xf32>, vector<32x64xf32>, vector<8x64xf32> -> vector<8x64xf32>
    %c0_12 = arith.constant 0 : index
    %c0_13 = arith.constant 0 : index
    %13 = vector.load %arg8[%c0_12, %c0_13] : memref<1x64xf32, #tpu.memory_space<vmem>>, vector<1x64xf32>
    %14 = vector.broadcast %13 : vector<1x64xf32> to vector<8x64xf32>
    %15 = arith.addf %12, %14 : vector<8x64xf32>
    %16 = vector.extract_strided_slice %15 {offsets = [0, 0], sizes = [8, 32], strides = [1, 1]} : vector<8x64xf32> to vector<8x32xf32>
    %17 = vector.shape_cast %16 : vector<8x32xf32> to vector<8x8x4xf32>
    %18 = tpu.transpose %17, [1, 0, 2] : vector<8x8x4xf32> -> vector<8x8x4xf32>
    %19 = vector.extract_strided_slice %15 {offsets = [0, 32], sizes = [8, 32], strides = [1, 1]} : vector<8x64xf32> to vector<8x32xf32>
    %20 = vector.shape_cast %19 : vector<8x32xf32> to vector<8x8x4xf32>
    %21 = tpu.transpose %20, [1, 0, 2] : vector<8x8x4xf32> -> vector<8x8x4xf32>
    "tpu.trace_start"() <{level = 10 : i32, message = "hqd,hkd->hqk"}> : () -> ()
    %cst_14 = arith.constant dense<0.000000e+00> : vector<8x8x8xf32>
    %22 = tpu.matmul %8, %18, %cst_14 {dimension_numbers = #tpu.dot_dimension_numbers<[2], [2], [1], [1], [0, 0, 0, 1, 1, 1], [0], [0]>} : vector<8x8x4xf32>, vector<8x8x4xf32>, vector<8x8x8xf32> -> vector<8x8x8xf32>
    "tpu.trace_stop"() : () -> ()
    %cst_15 = arith.constant dense<0xFF800000> : vector<8x8xf32>
    %23 = vector.multi_reduction <maximumf>, %22, %cst_15 [2] : vector<8x8x8xf32> to vector<8x8xf32>
    %24 = vector.shape_cast %23 : vector<8x8xf32> to vector<8x8x1xf32>
    %25 = vector.broadcast %24 : vector<8x8x1xf32> to vector<8x8x8xf32>
    %26 = arith.subf %22, %25 : vector<8x8x8xf32>
    %27 = math.exp %26 : vector<8x8x8xf32>
    %cst_16 = arith.constant dense<0.000000e+00> : vector<8x8xf32>
    %28 = vector.multi_reduction <add>, %27, %cst_16 [2] : vector<8x8x8xf32> to vector<8x8xf32>
    %29 = vector.shape_cast %28 : vector<8x8xf32> to vector<8x8x1xf32>
    "tpu.trace_start"() <{level = 10 : i32, message = "hqk,hkd->hqd"}> : () -> ()
    %cst_17 = arith.constant dense<0.000000e+00> : vector<8x8x4xf32>
    %30 = tpu.matmul %27, %21, %cst_17 {dimension_numbers = #tpu.dot_dimension_numbers<[2], [1], [1], [2], [0, 0, 0, 1, 1, 2], [0], [0]>} : vector<8x8x8xf32>, vector<8x8x4xf32>, vector<8x8x4xf32> -> vector<8x8x4xf32>
    "tpu.trace_stop"() : () -> ()
    %31 = tpu.reciprocal %29 {approx = true} : vector<8x8x1xf32> -> vector<8x8x1xf32>
    %32 = vector.broadcast %31 : vector<8x8x1xf32> to vector<8x8x4xf32>
    %33 = arith.mulf %30, %32 : vector<8x8x4xf32>
    %34 = tpu.transpose %33, [1, 0, 2] : vector<8x8x4xf32> -> vector<8x8x4xf32>
    %35 = vector.shape_cast %34 : vector<8x8x4xf32> to vector<8x32xf32>
    %c0_18 = arith.constant 0 : index
    %c0_19 = arith.constant 0 : index
    %36 = vector.load %arg9[%c0_18, %c0_19] : memref<32x32xf32, #tpu.memory_space<vmem>>, vector<32x32xf32>
    %cst_20 = arith.constant dense<0.000000e+00> : vector<8x32xf32>
    %37 = tpu.matmul %35, %36, %cst_20 {dimension_numbers = #tpu.dot_dimension_numbers<[1], [0], [0], [1], [0, 0, 1, 1], [], []>} : vector<8x32xf32>, vector<32x32xf32>, vector<8x32xf32> -> vector<8x32xf32>
    %c0_21 = arith.constant 0 : index
    %c0_22 = arith.constant 0 : index
    %38 = vector.load %arg10[%c0_21, %c0_22] : memref<1x32xf32, #tpu.memory_space<vmem>>, vector<1x32xf32>
    %39 = vector.broadcast %38 : vector<1x32xf32> to vector<8x32xf32>
    %40 = arith.addf %37, %39 : vector<8x32xf32>
    %c0_23 = arith.constant 0 : index
    %c0_24 = arith.constant 0 : index
    %c0_25 = arith.constant 0 : index
    %41 = vector.load %arg11[%c0_23, %c0_24, %c0_25] : memref<1x8x32xf32, #tpu.memory_space<vmem>>, vector<1x8x32xf32>
    %42 = vector.shape_cast %41 : vector<1x8x32xf32> to vector<8x32xf32>
    %43 = vector.shape_cast %40 : vector<8x32xf32> to vector<1x8x32xf32>
    tpu.vector_store %arg11[%c0_23, %c0_24, %c0_25], %43 {strides = array<i32>} : memref<1x8x32xf32, #tpu.memory_space<vmem>>, vector<1x8x32xf32>,
    return
  }
  func.func @transform_0(%arg0: i32, %arg1: i32, %arg2: i32) -> (i32, i32, i32) {
    %c0_i32 = arith.constant 0 : i32
    %c0_i32_0 = arith.constant 0 : i32
    return %arg0, %arg1, %c0_i32 : i32, i32, i32
  }
  func.func @transform_1(%arg0: i32, %arg1: i32, %arg2: i32) -> (i32, i32, i32) {
    %c0_i32 = arith.constant 0 : i32
    %c0_i32_0 = arith.constant 0 : i32
    return %arg0, %arg2, %c0_i32 : i32, i32, i32
  }
  func.func @transform_2(%arg0: i32, %arg1: i32, %arg2: i32) -> (i32, i32) {
    %c0_i32 = arith.constant 0 : i32
    %c0_i32_0 = arith.constant 0 : i32
    %c0_i32_1 = arith.constant 0 : i32
    return %c0_i32, %c0_i32_0 : i32, i32
  }
  func.func @transform_3(%arg0: i32, %arg1: i32, %arg2: i32) -> (i32, i32) {
    %c0_i32 = arith.constant 0 : i32
    %c0_i32_0 = arith.constant 0 : i32
    %c0_i32_1 = arith.constant 0 : i32
    return %c0_i32, %c0_i32_0 : i32, i32
  }
  func.func @transform_4(%arg0: i32, %arg1: i32, %arg2: i32) -> (i32, i32) {
    %c0_i32 = arith.constant 0 : i32
    %c0_i32_0 = arith.constant 0 : i32
    %c0_i32_1 = arith.constant 0 : i32
    return %c0_i32, %c0_i32_0 : i32, i32
  }
  func.func @transform_5(%arg0: i32, %arg1: i32, %arg2: i32) -> (i32, i32) {
    %c0_i32 = arith.constant 0 : i32
    %c0_i32_0 = arith.constant 0 : i32
    %c0_i32_1 = arith.constant 0 : i32
    return %c0_i32, %c0_i32_0 : i32, i32
  }
  func.func @transform_6(%arg0: i32, %arg1: i32, %arg2: i32) -> (i32, i32) {
    %c0_i32 = arith.constant 0 : i32
    %c0_i32_0 = arith.constant 0 : i32
    %c0_i32_1 = arith.constant 0 : i32
    return %c0_i32, %c0_i32_0 : i32, i32
  }
  func.func @transform_7(%arg0: i32, %arg1: i32, %arg2: i32) -> (i32, i32) {
    %c0_i32 = arith.constant 0 : i32
    %c0_i32_0 = arith.constant 0 : i32
    %c0_i32_1 = arith.constant 0 : i32
    return %c0_i32, %c0_i32_0 : i32, i32
  }
  func.func @transform_8(%arg0: i32, %arg1: i32, %arg2: i32) -> (i32, i32, i32) {
    %c0_i32 = arith.constant 0 : i32
    %c0_i32_0 = arith.constant 0 : i32
    return %arg0, %arg1, %c0_i32 : i32, i32, i32
  }
}

</mosaic_0001>

<llo_original>
// kernel: tpu_custom_call.1
$region0: #{tpu_custom_call.1}
  #allocation0 [shape = 'u32[]', space=smem, size = 0x4, offset = 0x4, fixed_abs, tag = 'smem constant byte address 0x4 - core index']
  #allocation1 [shape = 'u32[144,128]{1,0:T(1,128)}', space=vmem, size = 0x12000, scoped, tag = 'internal scratch']
  #allocation2 [shape = 'f32[8,8,4]{2,1,0:T(8,128)}', space=vmem, size = 0x8000, scoped, tag = 'scratch operand']
  #allocation3 [shape = 'f32[8,8,1]{2,1,0:T(8,128)}', space=vmem, size = 0x8000, scoped, tag = 'scratch operand']
  #allocation4 [shape = 'f32[8,8,1]{2,1,0:T(8,128)}', space=vmem, size = 0x8000, scoped, tag = 'scratch operand']
  #allocation5 [shape = 'f32[8,8,4]{2,1,0:T(8,128)}', space=vmem, size = 0x8000, scoped, tag = 'scratch operand']
  %s0 = inlined_call_operand.hbm [shape: f32[2,8,32], index: 0, kind: input, shape index: {}]
  %s1 = inlined_call_operand.hbm [shape: f32[2,8,32], index: 1, kind: input, shape index: {}]
  %s2 = inlined_call_operand.hbm [shape: f32[32,32], index: 2, kind: input, shape index: {}]
  %s3 = inlined_call_operand.vmem [shape: f32[1,32], index: 3, kind: input, shape index: {}]
  %s4 = inlined_call_operand.hbm [shape: f32[32,64], index: 4, kind: input, shape index: {}]
  %s5 = inlined_call_operand.vmem [shape: f32[1,64], index: 5, kind: input, shape index: {}]
  %s6 = inlined_call_operand.hbm [shape: f32[32,32], index: 6, kind: input, shape index: {}]
  %s7 = inlined_call_operand.vmem [shape: f32[1,32], index: 7, kind: input, shape index: {}]
  %s8 = inlined_call_operand.hbm [shape: f32[2,8,32], index: 8, kind: output, shape index: {}]
  %s9 = sld [smem:[#allocation0]]
  $region85: #{tpu_custom_call.1} parent=0
    _
  %s11 = ssub.s32 1, %s9
  %s12 = scalar_select 0, %s11, %s9
  $region1: #{tpu_custom_call.1} parent=0
    #allocation6 [shape = 'u8[8192]{0}', space=vmem, size = 0x2000, scoped, tag = 'input window, operand 0']
    #allocation7 [shape = 's32[2]{0}', space=sflag, size = 0x8, scoped, tag = 'scoped memory for tpu_custom_call.1']
    #allocation8 [shape = 's32[2]{0}', space=sflag, size = 0x8, scoped, tag = 'scoped memory for tpu_custom_call.1']
    #allocation9 [shape = 'u8[8192]{0}', space=vmem, size = 0x2000, scoped, tag = 'input window, operand 1']
    #allocation10 [shape = 's32[2]{0}', space=sflag, size = 0x8, scoped, tag = 'scoped memory for tpu_custom_call.1']
    #allocation11 [shape = 'u8[16384]{0}', space=vmem, size = 0x4000, scoped, tag = 'input window, operand 2, single buffered']
    #allocation12 [shape = 'u8[16384]{0}', space=vmem, size = 0x4000, scoped, tag = 'input window, operand 4, single buffered']
    #allocation13 [shape = 's32[1]{0}', space=sflag, size = 0x4, scoped, tag = 'scoped memory for tpu_custom_call.1']
    #allocation14 [shape = 'u8[16384]{0}', space=vmem, size = 0x4000, scoped, tag = 'input window, operand 6, single buffered']
    #allocation15 [shape = 'u8[8192]{0}', space=vmem, size = 0x2000, scoped, tag = 'output window, operand 0']
    %13 = vsyncpa [#allocation7], 0
    %s14 = scalar_lea.sflag [#allocation7], 1
    %15 = vsyncpa %s14, 0
    %16 = vsyncpa [#allocation10], 0
    %s17 = scalar_lea.sflag [#allocation10], 1
    %18 = vsyncpa %s17, 0
    %19 = vsyncpa [#allocation13], 0
    %20 = vsyncpa [#allocation8], 0
    %s21 = scalar_lea.sflag [#allocation8], 1
    %22 = vsyncpa %s21, 0
    loop: start=0, step=1, limit=4
    $region2: #{tpu_custom_call.1} parent=1 // loop_pre_header
      _
    $region3: #{tpu_custom_call.1} parent=1 // loop_header
      %s24 = sphi 0, %s28
      %p25 = scmp.ge.s32.totalorder %s24, 4
      %s31 = sphi 0, %s50
      %s32 = sphi 0, %s46
      %s33 = sphi 0, %s42
      %s34 = sphi 0, %s31
      %s35 = sphi 0, %s32
      %s36 = sphi 0, %s33
      %s37 = sphi 0, %s34
      %s38 = sphi 0, %s35
      %s39 = sphi 0, %s36
      %s55 = sphi 0, %s57
      %s58 = sphi 0, %s55
      %s59 = sphi 0, %s58
      %s75 = sphi 0, %s59
      %s83 = sphi 0, %s85
      %s86 = sphi 0, %s83
      %s87 = sphi 0, %s86
      %s103 = sphi 0, %s87
      %s107 = sphi 0, %s107
      %s109 = sphi 0, %s107
      %s110 = sphi 0, %s109
      %s124 = sphi 0, %s110
      %s128 = sphi 0, %s128
      %s130 = sphi 0, %s128
      %s131 = sphi 0, %s130
      %s145 = sphi 0, %s131
      %s149 = sphi 0, %s149
      %s151 = sphi 0, %s149
      %s152 = sphi 0, %s151
      %s166 = sphi 0, %s152
      %s170 = sphi 0, %s170
      %s172 = sphi 0, %s170
      %s173 = sphi 0, %s172
      %s187 = sphi 0, %s173
      %s191 = sphi 0, %s191
      %s193 = sphi 0, %s191
      %s194 = sphi 0, %s193
      %s208 = sphi 0, %s194
      %s212 = sphi 0, %s212
      %s214 = sphi 0, %s212
      %s215 = sphi 0, %s214
      %s229 = sphi 0, %s215
      %s237 = sphi 0, %s239
      %s240 = sphi 0, %s237
      %s241 = sphi 0, %s240
      %s257 = sphi 0, %s241
    $region4: #{tpu_custom_call.1} parent=1 // loop_header_branch
      %27 = sbr.rel (%p25) target = $region8
    $region5: #{tpu_custom_call.1} parent=1 // loop_body
      %s29 = ssub.s32 %s24, 1
      %s30 = ssub.s32 %s24, 2
      %s40 = sadd.s32 1, %s33
      %p41 = scmp.ge.s32.totalorder %s40, 1
      %s42 = scalar_select %p41, 0, %s40
      %s43 = sadd.s32 1, %s32
      %s44 = scalar_select %p41, %s43, %s32
      %p45 = scmp.ge.s32.totalorder %s44, 1
      %s46 = scalar_select %p45, 0, %s44
      %s47 = sadd.s32 1, %s31
      %s48 = scalar_select %p45, %s47, %s31
      %p49 = scmp.ge.s32.totalorder %s48, 2
      %s50 = scalar_select %p49, 0, %s48
      %s51 = ssub.s32 %s31, %s50
      %s52 = ssub.s32 %s32, %s46
      %s53 = sor.u32 %s51, %s52
      %p54 = scmp.eq.s32.totalorder %s53, 0
      %s56 = sadd.s32 %s55, 1
      %s57 = scalar_select %p54, %s55, %s56
      %p60 = pneg %p54
      %p61 = scmp.eq.s32.totalorder %s24, 1
      %p62 = por %p60, %p61
      %p63 = scmp.ne.s32.totalorder %s55, %s58
      %p64 = scmp.eq.s32.totalorder %s24, 0
      %p65 = por %p63, %p64
      %p66 = scmp.ne.s32.totalorder %s55, %s58
      %p67 = scmp.eq.s32.totalorder %s29, 1
      %p68 = por %p66, %p67
      %p69 = scmp.ne.s32.totalorder %s58, %s59
      %p70 = scmp.eq.s32.totalorder %s29, 0
      %p71 = por %p69, %p70
      %p72 = scmp.ne.s32.totalorder %s58, %s59
      %p73 = scmp.eq.s32.totalorder %s30, 1
      %p74 = por %p72, %p73
      %p76 = scmp.ne.s32.totalorder %s59, %s75
      %p77 = scmp.eq.s32.totalorder %s30, 0
      %p78 = por %p76, %p77
      %s79 = ssub.s32 %s31, %s50
      %s80 = ssub.s32 %s33, %s42
      %s81 = sor.u32 %s79, %s80
      %p82 = scmp.eq.s32.totalorder %s81, 0
      %s84 = sadd.s32 %s83, 1
      %s85 = scalar_select %p82, %s83, %s84
      %p88 = pneg %p82
      %p89 = scmp.eq.s32.totalorder %s24, 1
      %p90 = por %p88, %p89
      %p91 = scmp.ne.s32.totalorder %s83, %s86
      %p92 = scmp.eq.s32.totalorder %s24, 0
      %p93 = por %p91, %p92
      %p94 = scmp.ne.s32.totalorder %s83, %s86
      %p95 = scmp.eq.s32.totalorder %s29, 1
      %p96 = por %p94, %p95
      %p97 = scmp.ne.s32.totalorder %s86, %s87
      %p98 = scmp.eq.s32.totalorder %s29, 0
      %p99 = por %p97, %p98
      %p100 = scmp.ne.s32.totalorder %s86, %s87
      %p101 = scmp.eq.s32.totalorder %s30, 1
      %p102 = por %p100, %p101
      %p104 = scmp.ne.s32.totalorder %s87, %s103
      %p105 = scmp.eq.s32.totalorder %s30, 0
      %p106 = por %p104, %p105
      %s108 = sadd.s32 %s107, 1
      %p111 = scmp.eq.s32.totalorder %s24, 1
      %p112 = scmp.ne.s32.totalorder %s107, %s109
      %p113 = scmp.eq.s32.totalorder %s24, 0
      %p114 = por %p112, %p113
      %p115 = scmp.ne.s32.totalorder %s107, %s109
      %p116 = scmp.eq.s32.totalorder %s29, 1
      %p117 = por %p115, %p116
      %p118 = scmp.ne.s32.totalorder %s109, %s110
      %p119 = scmp.eq.s32.totalorder %s29, 0
      %p120 = por %p118, %p119
      %p121 = scmp.ne.s32.totalorder %s109, %s110
      %p122 = scmp.eq.s32.totalorder %s30, 1
      %p123 = por %p121, %p122
      %p125 = scmp.ne.s32.totalorder %s110, %s124
      %p126 = scmp.eq.s32.totalorder %s30, 0
      %p127 = por %p125, %p126
      %s129 = sadd.s32 %s128, 1
      %p132 = scmp.eq.s32.totalorder %s24, 1
      %p133 = scmp.ne.s32.totalorder %s128, %s130
      %p134 = scmp.eq.s32.totalorder %s24, 0
      %p135 = por %p133, %p134
      %p136 = scmp.ne.s32.totalorder %s128, %s130
      %p137 = scmp.eq.s32.totalorder %s29, 1
      %p138 = por %p136, %p137
      %p139 = scmp.ne.s32.totalorder %s130, %s131
      %p140 = scmp.eq.s32.totalorder %s29, 0
      %p141 = por %p139, %p140
      %p142 = scmp.ne.s32.totalorder %s130, %s131
      %p143 = scmp.eq.s32.totalorder %s30, 1
      %p144 = por %p142, %p143
      %p146 = scmp.ne.s32.totalorder %s131, %s145
      %p147 = scmp.eq.s32.totalorder %s30, 0
      %p148 = por %p146, %p147
      %s150 = sadd.s32 %s149, 1
      %p153 = scmp.eq.s32.totalorder %s24, 1
      %p154 = scmp.ne.s32.totalorder %s149, %s151
      %p155 = scmp.eq.s32.totalorder %s24, 0
      %p156 = por %p154, %p155
      %p157 = scmp.ne.s32.totalorder %s149, %s151
      %p158 = scmp.eq.s32.totalorder %s29, 1
      %p159 = por %p157, %p158
      %p160 = scmp.ne.s32.totalorder %s151, %s152
      %p161 = scmp.eq.s32.totalorder %s29, 0
      %p162 = por %p160, %p161
      %p163 = scmp.ne.s32.totalorder %s151, %s152
      %p164 = scmp.eq.s32.totalorder %s30, 1
      %p165 = por %p163, %p164
      %p167 = scmp.ne.s32.totalorder %s152, %s166
      %p168 = scmp.eq.s32.totalorder %s30, 0
      %p169 = por %p167, %p168
      %s171 = sadd.s32 %s170, 1
      %p174 = scmp.eq.s32.totalorder %s24, 1
      %p175 = scmp.ne.s32.totalorder %s170, %s172
      %p176 = scmp.eq.s32.totalorder %s24, 0
      %p177 = por %p175, %p176
      %p178 = scmp.ne.s32.totalorder %s170, %s172
      %p179 = scmp.eq.s32.totalorder %s29, 1
      %p180 = por %p178, %p179
      %p181 = scmp.ne.s32.totalorder %s172, %s173
      %p182 = scmp.eq.s32.totalorder %s29, 0
      %p183 = por %p181, %p182
      %p184 = scmp.ne.s32.totalorder %s172, %s173
      %p185 = scmp.eq.s32.totalorder %s30, 1
      %p186 = por %p184, %p185
      %p188 = scmp.ne.s32.totalorder %s173, %s187
      %p189 = scmp.eq.s32.totalorder %s30, 0
      %p190 = por %p188, %p189
      %s192 = sadd.s32 %s191, 1
      %p195 = scmp.eq.s32.totalorder %s24, 1
      %p196 = scmp.ne.s32.totalorder %s191, %s193
      %p197 = scmp.eq.s32.totalorder %s24, 0
      %p198 = por %p196, %p197
      %p199 = scmp.ne.s32.totalorder %s191, %s193
      %p200 = scmp.eq.s32.totalorder %s29, 1
      %p201 = por %p199, %p200
      %p202 = scmp.ne.s32.totalorder %s193, %s194
      %p203 = scmp.eq.s32.totalorder %s29, 0
      %p204 = por %p202, %p203
      %p205 = scmp.ne.s32.totalorder %s193, %s194
      %p206 = scmp.eq.s32.totalorder %s30, 1
      %p207 = por %p205, %p206
      %p209 = scmp.ne.s32.totalorder %s194, %s208
      %p210 = scmp.eq.s32.totalorder %s30, 0
      %p211 = por %p209, %p210
      %s213 = sadd.s32 %s212, 1
      %p216 = scmp.eq.s32.totalorder %s24, 1
      %p217 = scmp.ne.s32.totalorder %s212, %s214
      %p218 = scmp.eq.s32.totalorder %s24, 0
      %p219 = por %p217, %p218
      %p220 = scmp.ne.s32.totalorder %s212, %s214
      %p221 = scmp.eq.s32.totalorder %s29, 1
      %p222 = por %p220, %p221
      %p223 = scmp.ne.s32.totalorder %s214, %s215
      %p224 = scmp.eq.s32.totalorder %s29, 0
      %p225 = por %p223, %p224
      %p226 = scmp.ne.s32.totalorder %s214, %s215
      %p227 = scmp.eq.s32.totalorder %s30, 1
      %p228 = por %p226, %p227
      %p230 = scmp.ne.s32.totalorder %s215, %s229
      %p231 = scmp.eq.s32.totalorder %s30, 0
      %p232 = por %p230, %p231
      %s233 = ssub.s32 %s31, %s50
      %s234 = ssub.s32 %s32, %s46
      %s235 = sor.u32 %s233, %s234
      %p236 = scmp.eq.s32.totalorder %s235, 0
      %s238 = sadd.s32 %s237, 1
      %s239 = scalar_select %p236, %s237, %s238
      %p242 = pneg %p236
      %p243 = scmp.eq.s32.totalorder %s24, 1
      %p244 = por %p242, %p243
      %p245 = scmp.ne.s32.totalorder %s237, %s240
      %p246 = scmp.eq.s32.totalorder %s24, 0
      %p247 = por %p245, %p246
      %p248 = scmp.ne.s32.totalorder %s237, %s240
      %p249 = scmp.eq.s32.totalorder %s29, 1
      %p250 = por %p248, %p249
      %p251 = scmp.ne.s32.totalorder %s240, %s241
      %p252 = scmp.eq.s32.totalorder %s29, 0
      %p253 = por %p251, %p252
      %p254 = scmp.ne.s32.totalorder %s240, %s241
      %p255 = scmp.eq.s32.totalorder %s30, 1
      %p256 = por %p254, %p255
      %p258 = scmp.ne.s32.totalorder %s241, %s257
      %p259 = scmp.eq.s32.totalorder %s30, 0
      %p260 = por %p258, %p259
      %p261 = scmp.le.s32.totalorder 1, %s24
      %p262 = scmp.lt.s32.totalorder %s24, 3
      %p263 = pnand %p261, %p262
      %p264 = pneg %p263
      // Predicated region
      $region9: #{tpu_custom_call.1} parent=5 // pred_check
        _
      $region10: #{tpu_custom_call.1} parent=5 // pred_check_branch
        %266 = sbr.rel (%p263) target = $region12
      $region11: #{tpu_custom_call.1} parent=5 // pred_region
        %s267 = ssub.s32 %s24, 1
        // Predicated region
        $region13: #{tpu_custom_call.1} parent=11 // pred_check
          %p268 = pneg %p120
        $region14: #{tpu_custom_call.1} parent=11 // pred_check_branch
          %270 = sbr.rel (%p268) target = $region16
        $region15: #{tpu_custom_call.1} parent=11 // pred_region
          %s272 = ssub.s32 512, 512
          %273 = vsyncadd [#allocation10], %s272
          %s274 = sshll.u32 [#allocation11], 4
          %s275 = int_to_ptr.vmem [resolvable:$true] %s274
          %280 = dma.hbm_to_vmem [thread:$0]  %s2, 512, %s275, [#allocation10], 128, 128, 8
        $region16: #{tpu_custom_call.1} parent=11 // pred_fallthru
          _
        // Predicated region
        $region17: #{tpu_custom_call.1} parent=11 // pred_check
          %p281 = pneg %p141
        $region18: #{tpu_custom_call.1} parent=11 // pred_check_branch
          %283 = sbr.rel (%p281) target = $region20
        $region19: #{tpu_custom_call.1} parent=11 // pred_region
          _
        $region20: #{tpu_custom_call.1} parent=11 // pred_fallthru
          _
        // Predicated region
        $region21: #{tpu_custom_call.1} parent=11 // pred_check
          %p284 = pneg %p162
        $region22: #{tpu_custom_call.1} parent=11 // pred_check_branch
          %286 = sbr.rel (%p284) target = $region24
        $region23: #{tpu_custom_call.1} parent=11 // pred_region
          %s288 = ssub.s32 512, 512
          %289 = vsyncadd [#allocation13], %s288
          %s290 = sshll.u32 [#allocation12], 4
          %s291 = int_to_ptr.vmem [resolvable:$true] %s290
          %296 = dma.hbm_to_vmem [thread:$0]  %s4, 512, %s291, [#allocation13], 128, 128, 8
        $region24: #{tpu_custom_call.1} parent=11 // pred_fallthru
          _
        // Predicated region
        $region25: #{tpu_custom_call.1} parent=11 // pred_check
          %p297 = pneg %p183
        $region26: #{tpu_custom_call.1} parent=11 // pred_check_branch
          %299 = sbr.rel (%p297) target = $region28
        $region27: #{tpu_custom_call.1} parent=11 // pred_region
          _
        $region28: #{tpu_custom_call.1} parent=11 // pred_fallthru
          _
        // Predicated region
        $region29: #{tpu_custom_call.1} parent=11 // pred_check
          %p300 = pneg %p204
        $region30: #{tpu_custom_call.1} parent=11 // pred_check_branch
          %302 = sbr.rel (%p300) target = $region32
        $region31: #{tpu_custom_call.1} parent=11 // pred_region
          %s304 = ssub.s32 512, 512
          %305 = vsyncadd [#allocation13], %s304
          %s306 = sshll.u32 [#allocation14], 4
          %s307 = int_to_ptr.vmem [resolvable:$true] %s306
          %312 = dma.hbm_to_vmem [thread:$0]  %s6, 512, %s307, [#allocation13], 128, 128, 8
        $region32: #{tpu_custom_call.1} parent=11 // pred_fallthru
          _
        // Predicated region
        $region33: #{tpu_custom_call.1} parent=11 // pred_check
          %p313 = pneg %p225
        $region34: #{tpu_custom_call.1} parent=11 // pred_check_branch
          %315 = sbr.rel (%p313) target = $region36
        $region35: #{tpu_custom_call.1} parent=11 // pred_region
          _
        $region36: #{tpu_custom_call.1} parent=11 // pred_fallthru
          _
      $region12: #{tpu_custom_call.1} parent=5 // pred_fallthru
        _
      %p316 = scmp.lt.s32.totalorder %s24, 2
      // Predicated region
      $region37: #{tpu_custom_call.1} parent=5 // pred_check
        %p317 = pneg %p316
      $region38: #{tpu_custom_call.1} parent=5 // pred_check_branch
        %319 = sbr.rel (%p317) target = $region40
      $region39: #{tpu_custom_call.1} parent=5 // pred_region
        // Predicated region
        $region41: #{tpu_custom_call.1} parent=39 // pred_check
          %p320 = pneg %p65
        $region42: #{tpu_custom_call.1} parent=39 // pred_check_branch
          %322 = sbr.rel (%p320) target = $region44
        $region43: #{tpu_custom_call.1} parent=39 // pred_region
          %s323 = sand.u32 %s55, 1
          %s324 = scalar_lea.sflag [#allocation7], %s323
          %s325 = sand.u32 %s55, 1
          %s326 = smul.addr %s325, 8
          %s327 = scalar_lea.vmem [#allocation6], %s326
          %s329 = ssub.s32 128, 128
          %330 = vsyncadd %s324, %s329
          %s331 = sadd.s32 %s32, %s31
          %s332 = smul.addr %s331, 128
          %s333 = scalar_lea.hbm %s0, %s332
          %s335 = sshll.u32 %s327, 4
          %s336 = int_to_ptr.vmem [resolvable:$true] %s335
          %338 = dma.hbm_to_vmem [thread:$0]  %s333, 128, %s336, %s324
        $region44: #{tpu_custom_call.1} parent=39 // pred_fallthru
          _
        // Predicated region
        $region45: #{tpu_custom_call.1} parent=39 // pred_check
          %p339 = pneg %p93
        $region46: #{tpu_custom_call.1} parent=39 // pred_check_branch
          %341 = sbr.rel (%p339) target = $region48
        $region47: #{tpu_custom_call.1} parent=39 // pred_region
          %s342 = sand.u32 %s24, 1
          %s343 = scalar_lea.sflag [#allocation10], %s342
          %s344 = sand.u32 %s83, 1
          %s345 = smul.addr %s344, 8
          %s346 = scalar_lea.vmem [#allocation9], %s345
          %s348 = ssub.s32 128, 128
          %349 = vsyncadd %s343, %s348
          %s350 = sadd.s32 %s33, %s31
          %s351 = smul.addr %s350, 128
          %s352 = scalar_lea.hbm %s1, %s351
          %s354 = sshll.u32 %s346, 4
          %s355 = int_to_ptr.vmem [resolvable:$true] %s354
          %357 = dma.hbm_to_vmem [thread:$0]  %s352, 128, %s355, %s343
        $region48: #{tpu_custom_call.1} parent=39 // pred_fallthru
          _
      $region40: #{tpu_custom_call.1} parent=5 // pred_fallthru
        _
      %p358 = scmp.le.s32.totalorder 1, %s24
      %p359 = scmp.lt.s32.totalorder %s24, 3
      %p360 = pnand %p358, %p359
      %p361 = pneg %p360
      // Predicated region
      $region49: #{tpu_custom_call.1} parent=5 // pred_check
        _
      $region50: #{tpu_custom_call.1} parent=5 // pred_check_branch
        %363 = sbr.rel (%p360) target = $region52
      $region51: #{tpu_custom_call.1} parent=5 // pred_region
        %s364 = ssub.s32 %s24, 1
        %s365 = sand.u32 %s58, 1
        %s366 = scalar_lea.sflag [#allocation7], %s365
        %s367 = sand.u32 %s58, 1
        %s368 = smul.addr %s367, 8
        %s369 = scalar_lea.vmem [#allocation6], %s368
        // Predicated region
        $region53: #{tpu_custom_call.1} parent=51 // pred_check
          %p370 = pneg %p71
        $region54: #{tpu_custom_call.1} parent=51 // pred_check_branch
          %372 = sbr.rel (%p370) target = $region56
        $region55: #{tpu_custom_call.1} parent=51 // pred_region
          %373 = dma.done %s366, 128
        $region56: #{tpu_custom_call.1} parent=51 // pred_fallthru
          _
        %s374 = sand.u32 %s29, 1
        %s375 = scalar_lea.sflag [#allocation10], %s374
        %s376 = sand.u32 %s86, 1
        %s377 = smul.addr %s376, 8
        %s378 = scalar_lea.vmem [#allocation9], %s377
        // Predicated region
        $region57: #{tpu_custom_call.1} parent=51 // pred_check
          %p379 = pneg %p99
        $region58: #{tpu_custom_call.1} parent=51 // pred_check_branch
          %381 = sbr.rel (%p379) target = $region60
        $region59: #{tpu_custom_call.1} parent=51 // pred_region
          %382 = dma.done %s375, 128
        $region60: #{tpu_custom_call.1} parent=51 // pred_fallthru
          _
        // Predicated region
        $region61: #{tpu_custom_call.1} parent=51 // pred_check
          %p383 = pneg %p120
        $region62: #{tpu_custom_call.1} parent=51 // pred_check_branch
          %385 = sbr.rel (%p383) target = $region64
        $region63: #{tpu_custom_call.1} parent=51 // pred_region
          %386 = dma.done [#allocation10], 512
        $region64: #{tpu_custom_call.1} parent=51 // pred_fallthru
          _
        // Predicated region
        $region65: #{tpu_custom_call.1} parent=51 // pred_check
          %p387 = pneg %p162
        $region66: #{tpu_custom_call.1} parent=51 // pred_check_branch
          %389 = sbr.rel (%p387) target = $region68
        $region67: #{tpu_custom_call.1} parent=51 // pred_region
          %390 = dma.done [#allocation13], 512
        $region68: #{tpu_custom_call.1} parent=51 // pred_fallthru
          _
        // Predicated region
        $region69: #{tpu_custom_call.1} parent=51 // pred_check
          %p391 = pneg %p204
        $region70: #{tpu_custom_call.1} parent=51 // pred_check_branch
          %393 = sbr.rel (%p391) target = $region72
        $region71: #{tpu_custom_call.1} parent=51 // pred_region
          %394 = dma.done [#allocation13], 512
        $region72: #{tpu_custom_call.1} parent=51 // pred_fallthru
          _
        %s395 = sand.u32 %s58, 1
        %s396 = scalar_lea.sflag [#allocation7], %s395
        %s397 = sand.u32 %s58, 1
        %s398 = smul.addr %s397, 8
        %s399 = scalar_lea.vmem [#allocation6], %s398
        %p400 = pneg %p71
        %p401 = pneg %p68
        %s402 = sand.u32 %s29, 1
        %s403 = scalar_lea.sflag [#allocation10], %s402
        %s404 = sand.u32 %s86, 1
        %s405 = smul.addr %s404, 8
        %s406 = scalar_lea.vmem [#allocation9], %s405
        %p407 = pneg %p99
        %p408 = pneg %p96
        %p409 = pneg %p120
        %p410 = pneg %p117
        %p411 = pneg %p141
        %p412 = pneg %p138
        %p413 = pneg %p162
        %p414 = pneg %p159
        %p415 = pneg %p183
        %p416 = pneg %p180
        %p417 = pneg %p204
        %p418 = pneg %p201
        %p419 = pneg %p225
        %p420 = pneg %p222
        %p421 = pneg %p253
        %p422 = pneg %p250
        %s423 = sand.u32 %s240, 1
        %s424 = scalar_lea.sflag [#allocation8], %s423
        %s425 = sand.u32 %s240, 1
        %s426 = smul.addr %s425, 8
        %s427 = scalar_lea.vmem [#allocation15], %s426
        %v428 = vld [vmem:[%s369] sm:$0xff]
        %v429 = vld [vmem:[#allocation11] sm:$0xff]
        %v430 = vld [vmem:[#allocation11 + $0x8] sm:$0xff]
        %v431 = vld [vmem:[#allocation11 + $0x10] sm:$0xff]
        %v432 = vld [vmem:[#allocation11 + $0x18] sm:$0xff]
        %v433 = vld [vmem:[%s3] sm:$0x1]
        %v435 = vlaneseq
        %v436 = vshrl.u32 %v435, 7
        %v437 = vsub.s32 0, %v436
        %v438 = vrot.slane %v433, %v437
        %vm440 = vcmask 261120
        %v442 = vsel %vm440, %v428, 0
        %444 = vmatprep.subr.mxu0 0.0
        %445 = vmatpush1.msra.mxu0 %v429
        %446 = vmatprep.subr.mxu0 0.0
        %447 = vmatpush1.msra.mxu0 %v430
        %448 = vmatprep.subr.mxu0 0.0
        %449 = vmatpush1.msra.mxu0 %v431
        %450 = vmatprep.subr.mxu0 0.0
        %451 = vmatpush1.msra.mxu0 %v432
        %452 = vmatprep.subr.mxu0 0.0
        %453 = vmatpush1.msra.mxu0 0.0
        %454 = vmatprep.subr.mxu0 0.0
        %455 = vmatpush1.msra.mxu0 0.0
        %456 = vmatprep.subr.mxu0 0.0
        %457 = vmatpush1.msra.mxu0 0.0
        %458 = vmatprep.subr.mxu0 0.0
        %459 = vmatpush1.msra.mxu0 0.0
        %460 = vmatprep.subr.mxu0 0.0
        %461 = vmatpush1.msra.mxu0 0.0
        %462 = vmatprep.subr.mxu0 0.0
        %463 = vmatpush1.msra.mxu0 0.0
        %464 = vmatprep.subr.mxu0 0.0
        %465 = vmatpush1.msra.mxu0 0.0
        %466 = vmatprep.subr.mxu0 0.0
        %467 = vmatpush1.msra.mxu0 0.0
        %468 = vmatprep.subr.mxu0 0.0
        %469 = vmatpush1.msra.mxu0 0.0
        %470 = vmatprep.subr.mxu0 0.0
        %471 = vmatpush1.msra.mxu0 0.0
        %472 = vmatprep.subr.mxu0 0.0
        %473 = vmatpush1.msra.mxu0 0.0
        %474 = vmatprep.subr.mxu0 0.0
        %475 = vmatpush1.msra.mxu0 0.0
        %476 = vmatprep.subr.mxu0 0.0
        %477 = vmatpush1.msra.mxu0 0.0
        %478 = vmatprep.subr.mxu0 0.0
        %479 = vmatpush1.msra.mxu0 0.0
        %480 = vmatprep.subr.mxu0 0.0
        %481 = vmatpush1.msra.mxu0 0.0
        %482 = vmatprep.subr.mxu0 0.0
        %483 = vmatpush1.msra.mxu0 0.0
        %484 = vmatprep.subr.mxu0 0.0
        %485 = vmatpush1.msra.mxu0 0.0
        %486 = vmatprep.subr.mxu0 0.0
        %487 = vmatpush1.msra.mxu0 0.0
        %488 = vmatprep.subr.mxu0 0.0
        %489 = vmatpush1.msra.mxu0 0.0
        %490 = vmatprep.subr.mxu0 0.0
        %491 = vmatpush1.msra.mxu0 0.0
        %492 = vmatprep.subr.mxu0 0.0
        %493 = vmatpush1.msra.mxu0 0.0
        %494 = vmatprep.subr.mxu0 0.0
        %495 = vmatpush1.msra.mxu0 0.0
        %496 = vmatprep.subr.mxu0 0.0
        %497 = vmatpush1.msra.mxu0 0.0
        %498 = vmatprep.subr.mxu0 0.0
        %499 = vmatpush1.msra.mxu0 0.0
        %500 = vmatprep.subr.mxu0 0.0
        %501 = vmatpush1.msra.mxu0 0.0
        %502 = vmatprep.subr.mxu0 0.0
        %503 = vmatpush1.msra.mxu0 0.0
        %504 = vmatprep.subr.mxu0 0.0
        %505 = vmatpush1.msra.mxu0 0.0
        %506 = vmatprep.subr.mxu0 0.0
        %507 = vmatpush1.msra.mxu0 0.0
        %508 = vmatprep.mubr.f32.mxu0 0.0
        %509 = vmatmul.mubr.f32.gmra.mrb[0].mxu0 %v442
        %v510 = vpop.f32.mrb[0].mxu0
        %v511 = vadd.f32 %v438, %v510
        %v512 = vpop.f32.mrb[0].mxu0
        %513 = vdwg.mxu0
        %515 = vrot.lane.b32.xlu0 %v511, 124
        %v516 = vpop.permute.xlu0 %515
        %518 = vrot.lane.b32.xlu0 %v511, 120
        %v519 = vpop.permute.xlu0 %518
        %521 = vrot.lane.b32.xlu0 %v511, 116
        %v522 = vpop.permute.xlu0 %521
        %524 = vrot.lane.b32.xlu0 %v511, 112
        %v525 = vpop.permute.xlu0 %524
        %527 = vrot.lane.b32.xlu0 %v511, 108
        %v528 = vpop.permute.xlu0 %527
        %530 = vrot.lane.b32.xlu0 %v511, 104
        %v531 = vpop.permute.xlu0 %530
        %533 = vrot.lane.b32.xlu0 %v511, 100
        %v534 = vpop.permute.xlu0 %533
        %v536 = vcombine.low %v511, %v519
        %v537 = vcombine.high %v511, %v519
        %v539 = vunpack.c.l.s4 1983009808
        %v540 = vunpack.c.0.s8 %v539
        %v541 = vlaneseq
        %v542 = vshrl.u32 %v541, 7
        %v543 = vsub.s32 %v540, %v542
        %v544 = vrot.slane %v536, %v543
        %v546 = vunpack.c.l.s4 1983009808
        %v547 = vunpack.c.0.s8 %v546
        %v548 = vlaneseq
        %v549 = vshrl.u32 %v548, 7
        %v550 = vsub.s32 %v547, %v549
        %v551 = vrot.slane %v537, %v550
        %v552 = vcombine.low %v516, %v522
        %v553 = vcombine.high %v516, %v522
        %v555 = vunpack.c.l.s4 1983009808
        %v556 = vunpack.c.0.s8 %v555
        %v557 = vlaneseq
        %v558 = vshrl.u32 %v557, 7
        %v559 = vsub.s32 %v556, %v558
        %v560 = vrot.slane %v552, %v559
        %v562 = vunpack.c.l.s4 1983009808
        %v563 = vunpack.c.0.s8 %v562
        %v564 = vlaneseq
        %v565 = vshrl.u32 %v564, 7
        %v566 = vsub.s32 %v563, %v565
        %v567 = vrot.slane %v553, %v566
        %v568 = vcombine.low %v525, %v531
        %v569 = vcombine.high %v525, %v531
        %v571 = vunpack.c.l.s4 1983009808
        %v572 = vunpack.c.0.s8 %v571
        %v573 = vlaneseq
        %v574 = vshrl.u32 %v573, 7
        %v575 = vsub.s32 %v572, %v574
        %v576 = vrot.slane %v568, %v575
        %v578 = vunpack.c.l.s4 1983009808
        %v579 = vunpack.c.0.s8 %v578
        %v580 = vlaneseq
        %v581 = vshrl.u32 %v580, 7
        %v582 = vsub.s32 %v579, %v581
        %v583 = vrot.slane %v569, %v582
        %v584 = vcombine.low %v528, %v534
        %v585 = vcombine.high %v528, %v534
        %v587 = vunpack.c.l.s4 1983009808
        %v588 = vunpack.c.0.s8 %v587
        %v589 = vlaneseq
        %v590 = vshrl.u32 %v589, 7
        %v591 = vsub.s32 %v588, %v590
        %v592 = vrot.slane %v584, %v591
        %v594 = vunpack.c.l.s4 1983009808
        %v595 = vunpack.c.0.s8 %v594
        %v596 = vlaneseq
        %v597 = vshrl.u32 %v596, 7
        %v598 = vsub.s32 %v595, %v597
        %v599 = vrot.slane %v585, %v598
        %v600 = vcombine.low %v544, %v560
        %v601 = vcombine.high %v544, %v560
        %v603 = vunpack.c.l.s4 1934713408
        %v604 = vunpack.c.0.s8 %v603
        %v605 = vlaneseq
        %v606 = vshrl.u32 %v605, 7
        %v607 = vsub.s32 %v604, %v606
        %v608 = vrot.slane %v600, %v607
        %v610 = vunpack.c.l.s4 1934713408
        %v611 = vunpack.c.0.s8 %v610
        %v612 = vlaneseq
        %v613 = vshrl.u32 %v612, 7
        %v614 = vsub.s32 %v611, %v613
        %v615 = vrot.slane %v601, %v614
        %v616 = vcombine.low %v551, %v567
        %v617 = vcombine.high %v551, %v567
        %v619 = vunpack.c.l.s4 1934713408
        %v620 = vunpack.c.0.s8 %v619
        %v621 = vlaneseq
        %v622 = vshrl.u32 %v621, 7
        %v623 = vsub.s32 %v620, %v622
        %v624 = vrot.slane %v616, %v623
        %v626 = vunpack.c.l.s4 1934713408
        %v627 = vunpack.c.0.s8 %v626
        %v628 = vlaneseq
        %v629 = vshrl.u32 %v628, 7
        %v630 = vsub.s32 %v627, %v629
        %v631 = vrot.slane %v617, %v630
        %v632 = vcombine.low %v576, %v592
        %v633 = vcombine.high %v576, %v592
        %v635 = vunpack.c.l.s4 1934713408
        %v636 = vunpack.c.0.s8 %v635
        %v637 = vlaneseq
        %v638 = vshrl.u32 %v637, 7
        %v639 = vsub.s32 %v636, %v638
        %v640 = vrot.slane %v632, %v639
        %v642 = vunpack.c.l.s4 1934713408
        %v643 = vunpack.c.0.s8 %v642
        %v644 = vlaneseq
        %v645 = vshrl.u32 %v644, 7
        %v646 = vsub.s32 %v643, %v645
        %v647 = vrot.slane %v633, %v646
        %v648 = vcombine.low %v583, %v599
        %v649 = vcombine.high %v583, %v599
        %v651 = vunpack.c.l.s4 1934713408
        %v652 = vunpack.c.0.s8 %v651
        %v653 = vlaneseq
        %v654 = vshrl.u32 %v653, 7
        %v655 = vsub.s32 %v652, %v654
        %v656 = vrot.slane %v648, %v655
        %v658 = vunpack.c.l.s4 1934713408
        %v659 = vunpack.c.0.s8 %v658
        %v660 = vlaneseq
        %v661 = vshrl.u32 %v660, 7
        %v662 = vsub.s32 %v659, %v661
        %v663 = vrot.slane %v649, %v662
        %v664 = vcombine.low %v608, %v640
        %v665 = vcombine.high %v608, %v640
        %v666 = vcombine.low %v615, %v647
        %v667 = vcombine.high %v615, %v647
        %v668 = vcombine.low %v624, %v656
        %v669 = vcombine.high %v624, %v656
        %v670 = vcombine.low %v631, %v663
        %v671 = vcombine.high %v631, %v663
        %v672 = vcombine.low %v664, %v666
        %v673 = vcombine.high %v664, %v666
        %v675 = vunpack.c.l.s4 1983009808
        %v676 = vunpack.c.0.s8 %v675
        %v677 = vlaneseq
        %v678 = vshrl.u32 %v677, 7
        %v679 = vsub.s32 %v676, %v678
        %v680 = vrot.slane %v672, %v679
        %v682 = vunpack.c.l.s4 1983009808
        %v683 = vunpack.c.0.s8 %v682
        %v684 = vlaneseq
        %v685 = vshrl.u32 %v684, 7
        %v686 = vsub.s32 %v683, %v685
        %v687 = vrot.slane %v673, %v686
        %v688 = vcombine.low %v665, %v667
        %v689 = vcombine.high %v665, %v667
        %v691 = vunpack.c.l.s4 1983009808
        %v692 = vunpack.c.0.s8 %v691
        %v693 = vlaneseq
        %v694 = vshrl.u32 %v693, 7
        %v695 = vsub.s32 %v692, %v694
        %v696 = vrot.slane %v688, %v695
        %v698 = vunpack.c.l.s4 1983009808
        %v699 = vunpack.c.0.s8 %v698
        %v700 = vlaneseq
        %v701 = vshrl.u32 %v700, 7
        %v702 = vsub.s32 %v699, %v701
        %v703 = vrot.slane %v689, %v702
        %v704 = vcombine.low %v668, %v670
        %v705 = vcombine.high %v668, %v670
        %v707 = vunpack.c.l.s4 1983009808
        %v708 = vunpack.c.0.s8 %v707
        %v709 = vlaneseq
        %v710 = vshrl.u32 %v709, 7
        %v711 = vsub.s32 %v708, %v710
        %v712 = vrot.slane %v704, %v711
        %v714 = vunpack.c.l.s4 1983009808
        %v715 = vunpack.c.0.s8 %v714
        %v716 = vlaneseq
        %v717 = vshrl.u32 %v716, 7
        %v718 = vsub.s32 %v715, %v717
        %v719 = vrot.slane %v705, %v718
        %v720 = vcombine.low %v669, %v671
        %v721 = vcombine.high %v669, %v671
        %v723 = vunpack.c.l.s4 1983009808
        %v724 = vunpack.c.0.s8 %v723
        %v725 = vlaneseq
        %v726 = vshrl.u32 %v725, 7
        %v727 = vsub.s32 %v724, %v726
        %v728 = vrot.slane %v720, %v727
        %v730 = vunpack.c.l.s4 1983009808
        %v731 = vunpack.c.0.s8 %v730
        %v732 = vlaneseq
        %v733 = vshrl.u32 %v732, 7
        %v734 = vsub.s32 %v731, %v733
        %v735 = vrot.slane %v721, %v734
        %v736 = vcombine.low %v680, %v696
        %v737 = vcombine.high %v680, %v696
        %v739 = vunpack.c.l.s4 1934713408
        %v740 = vunpack.c.0.s8 %v739
        %v741 = vlaneseq
        %v742 = vshrl.u32 %v741, 7
        %v743 = vsub.s32 %v740, %v742
        %v744 = vrot.slane %v736, %v743
        %v746 = vunpack.c.l.s4 1934713408
        %v747 = vunpack.c.0.s8 %v746
        %v748 = vlaneseq
        %v749 = vshrl.u32 %v748, 7
        %v750 = vsub.s32 %v747, %v749
        %v751 = vrot.slane %v737, %v750
        %v752 = vcombine.low %v687, %v703
        %v753 = vcombine.high %v687, %v703
        %v755 = vunpack.c.l.s4 1934713408
        %v756 = vunpack.c.0.s8 %v755
        %v757 = vlaneseq
        %v758 = vshrl.u32 %v757, 7
        %v759 = vsub.s32 %v756, %v758
        %v760 = vrot.slane %v752, %v759
        %v762 = vunpack.c.l.s4 1934713408
        %v763 = vunpack.c.0.s8 %v762
        %v764 = vlaneseq
        %v765 = vshrl.u32 %v764, 7
        %v766 = vsub.s32 %v763, %v765
        %v767 = vrot.slane %v753, %v766
        %v768 = vcombine.low %v712, %v728
        %v769 = vcombine.high %v712, %v728
        %v771 = vunpack.c.l.s4 1934713408
        %v772 = vunpack.c.0.s8 %v771
        %v773 = vlaneseq
        %v774 = vshrl.u32 %v773, 7
        %v775 = vsub.s32 %v772, %v774
        %v776 = vrot.slane %v768, %v775
        %v778 = vunpack.c.l.s4 1934713408
        %v779 = vunpack.c.0.s8 %v778
        %v780 = vlaneseq
        %v781 = vshrl.u32 %v780, 7
        %v782 = vsub.s32 %v779, %v781
        %v783 = vrot.slane %v769, %v782
        %v784 = vcombine.low %v719, %v735
        %v785 = vcombine.high %v719, %v735
        %v787 = vunpack.c.l.s4 1934713408
        %v788 = vunpack.c.0.s8 %v787
        %v789 = vlaneseq
        %v790 = vshrl.u32 %v789, 7
        %v791 = vsub.s32 %v788, %v790
        %v792 = vrot.slane %v784, %v791
        %v794 = vunpack.c.l.s4 1934713408
        %v795 = vunpack.c.0.s8 %v794
        %v796 = vlaneseq
        %v797 = vshrl.u32 %v796, 7
        %v798 = vsub.s32 %v795, %v797
        %v799 = vrot.slane %v785, %v798
        %v800 = vcombine.low %v744, %v776
        %v801 = vcombine.high %v744, %v776
        %v802 = vcombine.low %v751, %v783
        %v803 = vcombine.high %v751, %v783
        %v804 = vcombine.low %v760, %v792
        %v805 = vcombine.high %v760, %v792
        %v806 = vcombine.low %v767, %v799
        %v807 = vcombine.high %v767, %v799
        %v808 = vld [vmem:[%s378] sm:$0xff]
        %v809 = vld [vmem:[#allocation12] sm:$0xff]
        %v810 = vld [vmem:[#allocation12 + $0x8] sm:$0xff]
        %v811 = vld [vmem:[#allocation12 + $0x10] sm:$0xff]
        %v812 = vld [vmem:[#allocation12 + $0x18] sm:$0xff]
        %v813 = vld [vmem:[%s5] sm:$0x1]
        %v815 = vlaneseq
        %v816 = vshrl.u32 %v815, 7
        %v817 = vsub.s32 0, %v816
        %v818 = vrot.slane %v813, %v817
        %v821 = vsel %vm440, %v808, 0
        %823 = vmatprep.subr.mxu0 0.0
        %824 = vmatpush1.msra.mxu0 %v809
        %825 = vmatprep.subr.mxu0 0.0
        %826 = vmatpush1.msra.mxu0 %v810
        %827 = vmatprep.subr.mxu0 0.0
        %828 = vmatpush1.msra.mxu0 %v811
        %829 = vmatprep.subr.mxu0 0.0
        %830 = vmatpush1.msra.mxu0 %v812
        %831 = vmatprep.subr.mxu0 0.0
        %832 = vmatpush1.msra.mxu0 0.0
        %833 = vmatprep.subr.mxu0 0.0
        %834 = vmatpush1.msra.mxu0 0.0
        %835 = vmatprep.subr.mxu0 0.0
        %836 = vmatpush1.msra.mxu0 0.0
        %837 = vmatprep.subr.mxu0 0.0
        %838 = vmatpush1.msra.mxu0 0.0
        %839 = vmatprep.subr.mxu0 0.0
        %840 = vmatpush1.msra.mxu0 0.0
        %841 = vmatprep.subr.mxu0 0.0
        %842 = vmatpush1.msra.mxu0 0.0
        %843 = vmatprep.subr.mxu0 0.0
        %844 = vmatpush1.msra.mxu0 0.0
        %845 = vmatprep.subr.mxu0 0.0
        %846 = vmatpush1.msra.mxu0 0.0
        %847 = vmatprep.subr.mxu0 0.0
        %848 = vmatpush1.msra.mxu0 0.0
        %849 = vmatprep.subr.mxu0 0.0
        %850 = vmatpush1.msra.mxu0 0.0
        %851 = vmatprep.subr.mxu0 0.0
        %852 = vmatpush1.msra.mxu0 0.0
        %853 = vmatprep.subr.mxu0 0.0
        %854 = vmatpush1.msra.mxu0 0.0
        %855 = vmatprep.subr.mxu0 0.0
        %856 = vmatpush1.msra.mxu0 0.0
        %857 = vmatprep.subr.mxu0 0.0
        %858 = vmatpush1.msra.mxu0 0.0
        %859 = vmatprep.subr.mxu0 0.0
        %860 = vmatpush1.msra.mxu0 0.0
        %861 = vmatprep.subr.mxu0 0.0
        %862 = vmatpush1.msra.mxu0 0.0
        %863 = vmatprep.subr.mxu0 0.0
        %864 = vmatpush1.msra.mxu0 0.0
        %865 = vmatprep.subr.mxu0 0.0
        %866 = vmatpush1.msra.mxu0 0.0
        %867 = vmatprep.subr.mxu0 0.0
        %868 = vmatpush1.msra.mxu0 0.0
        %869 = vmatprep.subr.mxu0 0.0
        %870 = vmatpush1.msra.mxu0 0.0
        %871 = vmatprep.subr.mxu0 0.0
        %872 = vmatpush1.msra.mxu0 0.0
        %873 = vmatprep.subr.mxu0 0.0
        %874 = vmatpush1.msra.mxu0 0.0
        %875 = vmatprep.subr.mxu0 0.0
        %876 = vmatpush1.msra.mxu0 0.0
        %877 = vmatprep.subr.mxu0 0.0
        %878 = vmatpush1.msra.mxu0 0.0
        %879 = vmatprep.subr.mxu0 0.0
        %880 = vmatpush1.msra.mxu0 0.0
        %881 = vmatprep.subr.mxu0 0.0
        %882 = vmatpush1.msra.mxu0 0.0
        %883 = vmatprep.subr.mxu0 0.0
        %884 = vmatpush1.msra.mxu0 0.0
        %885 = vmatprep.subr.mxu0 0.0
        %886 = vmatpush1.msra.mxu0 0.0
        %887 = vmatprep.mubr.f32.mxu0 0.0
        %888 = vmatmul.mubr.f32.gmra.mrb[0].mxu0 %v821
        %v889 = vpop.f32.mrb[0].mxu0
        %v890 = vadd.f32 %v818, %v889
        %v891 = vpop.f32.mrb[0].mxu0
        %892 = vdwg.mxu0
        %894 = vrot.lane.b32.xlu0 %v890, 124
        %v895 = vpop.permute.xlu0 %894
        %897 = vrot.lane.b32.xlu0 %v890, 120
        %v898 = vpop.permute.xlu0 %897
        %900 = vrot.lane.b32.xlu0 %v890, 116
        %v901 = vpop.permute.xlu0 %900
        %903 = vrot.lane.b32.xlu0 %v890, 112
        %v904 = vpop.permute.xlu0 %903
        %906 = vrot.lane.b32.xlu0 %v890, 108
        %v907 = vpop.permute.xlu0 %906
        %909 = vrot.lane.b32.xlu0 %v890, 104
        %v910 = vpop.permute.xlu0 %909
        %912 = vrot.lane.b32.xlu0 %v890, 100
        %v913 = vpop.permute.xlu0 %912
        %v915 = vcombine.low %v890, %v898
        %v916 = vcombine.high %v890, %v898
        %v918 = vunpack.c.l.s4 1983009808
        %v919 = vunpack.c.0.s8 %v918
        %v920 = vlaneseq
        %v921 = vshrl.u32 %v920, 7
        %v922 = vsub.s32 %v919, %v921
        %v923 = vrot.slane %v915, %v922
        %v925 = vunpack.c.l.s4 1983009808
        %v926 = vunpack.c.0.s8 %v925
        %v927 = vlaneseq
        %v928 = vshrl.u32 %v927, 7
        %v929 = vsub.s32 %v926, %v928
        %v930 = vrot.slane %v916, %v929
        %v931 = vcombine.low %v895, %v901
        %v932 = vcombine.high %v895, %v901
        %v934 = vunpack.c.l.s4 1983009808
        %v935 = vunpack.c.0.s8 %v934
        %v936 = vlaneseq
        %v937 = vshrl.u32 %v936, 7
        %v938 = vsub.s32 %v935, %v937
        %v939 = vrot.slane %v931, %v938
        %v941 = vunpack.c.l.s4 1983009808
        %v942 = vunpack.c.0.s8 %v941
        %v943 = vlaneseq
        %v944 = vshrl.u32 %v943, 7
        %v945 = vsub.s32 %v942, %v944
        %v946 = vrot.slane %v932, %v945
        %v947 = vcombine.low %v904, %v910
        %v948 = vcombine.high %v904, %v910
        %v950 = vunpack.c.l.s4 1983009808
        %v951 = vunpack.c.0.s8 %v950
        %v952 = vlaneseq
        %v953 = vshrl.u32 %v952, 7
        %v954 = vsub.s32 %v951, %v953
        %v955 = vrot.slane %v947, %v954
        %v957 = vunpack.c.l.s4 1983009808
        %v958 = vunpack.c.0.s8 %v957
        %v959 = vlaneseq
        %v960 = vshrl.u32 %v959, 7
        %v961 = vsub.s32 %v958, %v960
        %v962 = vrot.slane %v948, %v961
        %v963 = vcombine.low %v907, %v913
        %v964 = vcombine.high %v907, %v913
        %v966 = vunpack.c.l.s4 1983009808
        %v967 = vunpack.c.0.s8 %v966
        %v968 = vlaneseq
        %v969 = vshrl.u32 %v968, 7
        %v970 = vsub.s32 %v967, %v969
        %v971 = vrot.slane %v963, %v970
        %v973 = vunpack.c.l.s4 1983009808
        %v974 = vunpack.c.0.s8 %v973
        %v975 = vlaneseq
        %v976 = vshrl.u32 %v975, 7
        %v977 = vsub.s32 %v974, %v976
        %v978 = vrot.slane %v964, %v977
        %v979 = vcombine.low %v923, %v939
        %v980 = vcombine.high %v923, %v939
        %v982 = vunpack.c.l.s4 1934713408
        %v983 = vunpack.c.0.s8 %v982
        %v984 = vlaneseq
        %v985 = vshrl.u32 %v984, 7
        %v986 = vsub.s32 %v983, %v985
        %v987 = vrot.slane %v979, %v986
        %v989 = vunpack.c.l.s4 1934713408
        %v990 = vunpack.c.0.s8 %v989
        %v991 = vlaneseq
        %v992 = vshrl.u32 %v991, 7
        %v993 = vsub.s32 %v990, %v992
        %v994 = vrot.slane %v980, %v993
        %v995 = vcombine.low %v930, %v946
        %v996 = vcombine.high %v930, %v946
        %v998 = vunpack.c.l.s4 1934713408
        %v999 = vunpack.c.0.s8 %v998
        %v1000 = vlaneseq
        %v1001 = vshrl.u32 %v1000, 7
        %v1002 = vsub.s32 %v999, %v1001
        %v1003 = vrot.slane %v995, %v1002
        %v1005 = vunpack.c.l.s4 1934713408
        %v1006 = vunpack.c.0.s8 %v1005
        %v1007 = vlaneseq
        %v1008 = vshrl.u32 %v1007, 7
        %v1009 = vsub.s32 %v1006, %v1008
        %v1010 = vrot.slane %v996, %v1009
        %v1011 = vcombine.low %v955, %v971
        %v1012 = vcombine.high %v955, %v971
        %v1014 = vunpack.c.l.s4 1934713408
        %v1015 = vunpack.c.0.s8 %v1014
        %v1016 = vlaneseq
        %v1017 = vshrl.u32 %v1016, 7
        %v1018 = vsub.s32 %v1015, %v1017
        %v1019 = vrot.slane %v1011, %v1018
        %v1021 = vunpack.c.l.s4 1934713408
        %v1022 = vunpack.c.0.s8 %v1021
        %v1023 = vlaneseq
        %v1024 = vshrl.u32 %v1023, 7
        %v1025 = vsub.s32 %v1022, %v1024
        %v1026 = vrot.slane %v1012, %v1025
        %v1027 = vcombine.low %v962, %v978
        %v1028 = vcombine.high %v962, %v978
        %v1030 = vunpack.c.l.s4 1934713408
        %v1031 = vunpack.c.0.s8 %v1030
        %v1032 = vlaneseq
        %v1033 = vshrl.u32 %v1032, 7
        %v1034 = vsub.s32 %v1031, %v1033
        %v1035 = vrot.slane %v1027, %v1034
        %v1037 = vunpack.c.l.s4 1934713408
        %v1038 = vunpack.c.0.s8 %v1037
        %v1039 = vlaneseq
        %v1040 = vshrl.u32 %v1039, 7
        %v1041 = vsub.s32 %v1038, %v1040
        %v1042 = vrot.slane %v1028, %v1041
        %v1043 = vcombine.low %v987, %v1019
        %v1044 = vcombine.high %v987, %v1019
        %v1045 = vcombine.low %v994, %v1026
        %v1046 = vcombine.high %v994, %v1026
        %v1047 = vcombine.low %v1003, %v1035
        %v1048 = vcombine.high %v1003, %v1035
        %v1049 = vcombine.low %v1010, %v1042
        %v1050 = vcombine.high %v1010, %v1042
        %v1051 = vcombine.low %v1043, %v1045
        %v1052 = vcombine.high %v1043, %v1045
        %v1054 = vunpack.c.l.s4 1983009808
        %v1055 = vunpack.c.0.s8 %v1054
        %v1056 = vlaneseq
        %v1057 = vshrl.u32 %v1056, 7
        %v1058 = vsub.s32 %v1055, %v1057
        %v1059 = vrot.slane %v1051, %v1058
        %v1061 = vunpack.c.l.s4 1983009808
        %v1062 = vunpack.c.0.s8 %v1061
        %v1063 = vlaneseq
        %v1064 = vshrl.u32 %v1063, 7
        %v1065 = vsub.s32 %v1062, %v1064
        %v1066 = vrot.slane %v1052, %v1065
        %v1067 = vcombine.low %v1044, %v1046
        %v1068 = vcombine.high %v1044, %v1046
        %v1070 = vunpack.c.l.s4 1983009808
        %v1071 = vunpack.c.0.s8 %v1070
        %v1072 = vlaneseq
        %v1073 = vshrl.u32 %v1072, 7
        %v1074 = vsub.s32 %v1071, %v1073
        %v1075 = vrot.slane %v1067, %v1074
        %v1077 = vunpack.c.l.s4 1983009808
        %v1078 = vunpack.c.0.s8 %v1077
        %v1079 = vlaneseq
        %v1080 = vshrl.u32 %v1079, 7
        %v1081 = vsub.s32 %v1078, %v1080
        %v1082 = vrot.slane %v1068, %v1081
        %v1083 = vcombine.low %v1047, %v1049
        %v1084 = vcombine.high %v1047, %v1049
        %v1086 = vunpack.c.l.s4 1983009808
        %v1087 = vunpack.c.0.s8 %v1086
        %v1088 = vlaneseq
        %v1089 = vshrl.u32 %v1088, 7
        %v1090 = vsub.s32 %v1087, %v1089
        %v1091 = vrot.slane %v1083, %v1090
        %v1093 = vunpack.c.l.s4 1983009808
        %v1094 = vunpack.c.0.s8 %v1093
        %v1095 = vlaneseq
        %v1096 = vshrl.u32 %v1095, 7
        %v1097 = vsub.s32 %v1094, %v1096
        %v1098 = vrot.slane %v1084, %v1097
        %v1099 = vcombine.low %v1048, %v1050
        %v1100 = vcombine.high %v1048, %v1050
        %v1102 = vunpack.c.l.s4 1983009808
        %v1103 = vunpack.c.0.s8 %v1102
        %v1104 = vlaneseq
        %v1105 = vshrl.u32 %v1104, 7
        %v1106 = vsub.s32 %v1103, %v1105
        %v1107 = vrot.slane %v1099, %v1106
        %v1109 = vunpack.c.l.s4 1983009808
        %v1110 = vunpack.c.0.s8 %v1109
        %v1111 = vlaneseq
        %v1112 = vshrl.u32 %v1111, 7
        %v1113 = vsub.s32 %v1110, %v1112
        %v1114 = vrot.slane %v1100, %v1113
        %v1115 = vcombine.low %v1059, %v1075
        %v1116 = vcombine.high %v1059, %v1075
        %v1118 = vunpack.c.l.s4 1934713408
        %v1119 = vunpack.c.0.s8 %v1118
        %v1120 = vlaneseq
        %v1121 = vshrl.u32 %v1120, 7
        %v1122 = vsub.s32 %v1119, %v1121
        %v1123 = vrot.slane %v1115, %v1122
        %v1125 = vunpack.c.l.s4 1934713408
        %v1126 = vunpack.c.0.s8 %v1125
        %v1127 = vlaneseq
        %v1128 = vshrl.u32 %v1127, 7
        %v1129 = vsub.s32 %v1126, %v1128
        %v1130 = vrot.slane %v1116, %v1129
        %v1131 = vcombine.low %v1066, %v1082
        %v1132 = vcombine.high %v1066, %v1082
        %v1134 = vunpack.c.l.s4 1934713408
        %v1135 = vunpack.c.0.s8 %v1134
        %v1136 = vlaneseq
        %v1137 = vshrl.u32 %v1136, 7
        %v1138 = vsub.s32 %v1135, %v1137
        %v1139 = vrot.slane %v1131, %v1138
        %v1141 = vunpack.c.l.s4 1934713408
        %v1142 = vunpack.c.0.s8 %v1141
        %v1143 = vlaneseq
        %v1144 = vshrl.u32 %v1143, 7
        %v1145 = vsub.s32 %v1142, %v1144
        %v1146 = vrot.slane %v1132, %v1145
        %v1147 = vcombine.low %v1091, %v1107
        %v1148 = vcombine.high %v1091, %v1107
        %v1150 = vunpack.c.l.s4 1934713408
        %v1151 = vunpack.c.0.s8 %v1150
        %v1152 = vlaneseq
        %v1153 = vshrl.u32 %v1152, 7
        %v1154 = vsub.s32 %v1151, %v1153
        %v1155 = vrot.slane %v1147, %v1154
        %v1157 = vunpack.c.l.s4 1934713408
        %v1158 = vunpack.c.0.s8 %v1157
        %v1159 = vlaneseq
        %v1160 = vshrl.u32 %v1159, 7
        %v1161 = vsub.s32 %v1158, %v1160
        %v1162 = vrot.slane %v1148, %v1161
        %v1163 = vcombine.low %v1098, %v1114
        %v1164 = vcombine.high %v1098, %v1114
        %v1166 = vunpack.c.l.s4 1934713408
        %v1167 = vunpack.c.0.s8 %v1166
        %v1168 = vlaneseq
        %v1169 = vshrl.u32 %v1168, 7
        %v1170 = vsub.s32 %v1167, %v1169
        %v1171 = vrot.slane %v1163, %v1170
        %v1173 = vunpack.c.l.s4 1934713408
        %v1174 = vunpack.c.0.s8 %v1173
        %v1175 = vlaneseq
        %v1176 = vshrl.u32 %v1175, 7
        %v1177 = vsub.s32 %v1174, %v1176
        %v1178 = vrot.slane %v1164, %v1177
        %v1179 = vcombine.low %v1123, %v1155
        %v1180 = vcombine.high %v1123, %v1155
        %v1181 = vcombine.low %v1130, %v1162
        %v1182 = vcombine.high %v1130, %v1162
        %v1183 = vcombine.low %v1139, %v1171
        %v1184 = vcombine.high %v1139, %v1171
        %v1185 = vcombine.low %v1146, %v1178
        %v1186 = vcombine.high %v1146, %v1178
        %1187 = vrot.lane.b32.xlu0 %v890, 96
        %v1188 = vpop.permute.xlu0 %1187
        %1189 = vrot.lane.b32.xlu0 %v895, 96
        %v1190 = vpop.permute.xlu0 %1189
        %1191 = vrot.lane.b32.xlu0 %v898, 96
        %v1192 = vpop.permute.xlu0 %1191
        %1193 = vrot.lane.b32.xlu0 %v901, 96
        %v1194 = vpop.permute.xlu0 %1193
        %1195 = vrot.lane.b32.xlu0 %v904, 96
        %v1196 = vpop.permute.xlu0 %1195
        %1197 = vrot.lane.b32.xlu0 %v907, 96
        %v1198 = vpop.permute.xlu0 %1197
        %1199 = vrot.lane.b32.xlu0 %v910, 96
        %v1200 = vpop.permute.xlu0 %1199
        %1201 = vrot.lane.b32.xlu0 %v913, 96
        %v1202 = vpop.permute.xlu0 %1201
        %v1211 = vcombine.low %v1188, %v1192
        %v1212 = vcombine.high %v1188, %v1192
        %v1214 = vunpack.c.l.s4 1983009808
        %v1215 = vunpack.c.0.s8 %v1214
        %v1216 = vlaneseq
        %v1217 = vshrl.u32 %v1216, 7
        %v1218 = vsub.s32 %v1215, %v1217
        %v1219 = vrot.slane %v1211, %v1218
        %v1221 = vunpack.c.l.s4 1983009808
        %v1222 = vunpack.c.0.s8 %v1221
        %v1223 = vlaneseq
        %v1224 = vshrl.u32 %v1223, 7
        %v1225 = vsub.s32 %v1222, %v1224
        %v1226 = vrot.slane %v1212, %v1225
        %v1227 = vcombine.low %v1190, %v1194
        %v1228 = vcombine.high %v1190, %v1194
        %v1230 = vunpack.c.l.s4 1983009808
        %v1231 = vunpack.c.0.s8 %v1230
        %v1232 = vlaneseq
        %v1233 = vshrl.u32 %v1232, 7
        %v1234 = vsub.s32 %v1231, %v1233
        %v1235 = vrot.slane %v1227, %v1234
        %v1237 = vunpack.c.l.s4 1983009808
        %v1238 = vunpack.c.0.s8 %v1237
        %v1239 = vlaneseq
        %v1240 = vshrl.u32 %v1239, 7
        %v1241 = vsub.s32 %v1238, %v1240
        %v1242 = vrot.slane %v1228, %v1241
        %v1243 = vcombine.low %v1196, %v1200
        %v1244 = vcombine.high %v1196, %v1200
        %v1246 = vunpack.c.l.s4 1983009808
        %v1247 = vunpack.c.0.s8 %v1246
        %v1248 = vlaneseq
        %v1249 = vshrl.u32 %v1248, 7
        %v1250 = vsub.s32 %v1247, %v1249
        %v1251 = vrot.slane %v1243, %v1250
        %v1253 = vunpack.c.l.s4 1983009808
        %v1254 = vunpack.c.0.s8 %v1253
        %v1255 = vlaneseq
        %v1256 = vshrl.u32 %v1255, 7
        %v1257 = vsub.s32 %v1254, %v1256
        %v1258 = vrot.slane %v1244, %v1257
        %v1259 = vcombine.low %v1198, %v1202
        %v1260 = vcombine.high %v1198, %v1202
        %v1262 = vunpack.c.l.s4 1983009808
        %v1263 = vunpack.c.0.s8 %v1262
        %v1264 = vlaneseq
        %v1265 = vshrl.u32 %v1264, 7
        %v1266 = vsub.s32 %v1263, %v1265
        %v1267 = vrot.slane %v1259, %v1266
        %v1269 = vunpack.c.l.s4 1983009808
        %v1270 = vunpack.c.0.s8 %v1269
        %v1271 = vlaneseq
        %v1272 = vshrl.u32 %v1271, 7
        %v1273 = vsub.s32 %v1270, %v1272
        %v1274 = vrot.slane %v1260, %v1273
        %v1275 = vcombine.low %v1219, %v1235
        %v1276 = vcombine.high %v1219, %v1235
        %v1278 = vunpack.c.l.s4 1934713408
        %v1279 = vunpack.c.0.s8 %v1278
        %v1280 = vlaneseq
        %v1281 = vshrl.u32 %v1280, 7
        %v1282 = vsub.s32 %v1279, %v1281
        %v1283 = vrot.slane %v1275, %v1282
        %v1285 = vunpack.c.l.s4 1934713408
        %v1286 = vunpack.c.0.s8 %v1285
        %v1287 = vlaneseq
        %v1288 = vshrl.u32 %v1287, 7
        %v1289 = vsub.s32 %v1286, %v1288
        %v1290 = vrot.slane %v1276, %v1289
        %v1291 = vcombine.low %v1226, %v1242
        %v1292 = vcombine.high %v1226, %v1242
        %v1294 = vunpack.c.l.s4 1934713408
        %v1295 = vunpack.c.0.s8 %v1294
        %v1296 = vlaneseq
        %v1297 = vshrl.u32 %v1296, 7
        %v1298 = vsub.s32 %v1295, %v1297
        %v1299 = vrot.slane %v1291, %v1298
        %v1301 = vunpack.c.l.s4 1934713408
        %v1302 = vunpack.c.0.s8 %v1301
        %v1303 = vlaneseq
        %v1304 = vshrl.u32 %v1303, 7
        %v1305 = vsub.s32 %v1302, %v1304
        %v1306 = vrot.slane %v1292, %v1305
        %v1307 = vcombine.low %v1251, %v1267
        %v1308 = vcombine.high %v1251, %v1267
        %v1310 = vunpack.c.l.s4 1934713408
        %v1311 = vunpack.c.0.s8 %v1310
        %v1312 = vlaneseq
        %v1313 = vshrl.u32 %v1312, 7
        %v1314 = vsub.s32 %v1311, %v1313
        %v1315 = vrot.slane %v1307, %v1314
        %v1317 = vunpack.c.l.s4 1934713408
        %v1318 = vunpack.c.0.s8 %v1317
        %v1319 = vlaneseq
        %v1320 = vshrl.u32 %v1319, 7
        %v1321 = vsub.s32 %v1318, %v1320
        %v1322 = vrot.slane %v1308, %v1321
        %v1323 = vcombine.low %v1258, %v1274
        %v1324 = vcombine.high %v1258, %v1274
        %v1326 = vunpack.c.l.s4 1934713408
        %v1327 = vunpack.c.0.s8 %v1326
        %v1328 = vlaneseq
        %v1329 = vshrl.u32 %v1328, 7
        %v1330 = vsub.s32 %v1327, %v1329
        %v1331 = vrot.slane %v1323, %v1330
        %v1333 = vunpack.c.l.s4 1934713408
        %v1334 = vunpack.c.0.s8 %v1333
        %v1335 = vlaneseq
        %v1336 = vshrl.u32 %v1335, 7
        %v1337 = vsub.s32 %v1334, %v1336
        %v1338 = vrot.slane %v1324, %v1337
        %v1339 = vcombine.low %v1283, %v1315
        %v1340 = vcombine.high %v1283, %v1315
        %v1341 = vcombine.low %v1290, %v1322
        %v1342 = vcombine.high %v1290, %v1322
        %v1343 = vcombine.low %v1299, %v1331
        %v1344 = vcombine.high %v1299, %v1331
        %v1345 = vcombine.low %v1306, %v1338
        %v1346 = vcombine.high %v1306, %v1338
        %v1347 = vcombine.low %v1339, %v1341
        %v1348 = vcombine.high %v1339, %v1341
        %v1350 = vunpack.c.l.s4 1983009808
        %v1351 = vunpack.c.0.s8 %v1350
        %v1352 = vlaneseq
        %v1353 = vshrl.u32 %v1352, 7
        %v1354 = vsub.s32 %v1351, %v1353
        %v1355 = vrot.slane %v1347, %v1354
        %v1357 = vunpack.c.l.s4 1983009808
        %v1358 = vunpack.c.0.s8 %v1357
        %v1359 = vlaneseq
        %v1360 = vshrl.u32 %v1359, 7
        %v1361 = vsub.s32 %v1358, %v1360
        %v1362 = vrot.slane %v1348, %v1361
        %v1363 = vcombine.low %v1340, %v1342
        %v1364 = vcombine.high %v1340, %v1342
        %v1366 = vunpack.c.l.s4 1983009808
        %v1367 = vunpack.c.0.s8 %v1366
        %v1368 = vlaneseq
        %v1369 = vshrl.u32 %v1368, 7
        %v1370 = vsub.s32 %v1367, %v1369
        %v1371 = vrot.slane %v1363, %v1370
        %v1373 = vunpack.c.l.s4 1983009808
        %v1374 = vunpack.c.0.s8 %v1373
        %v1375 = vlaneseq
        %v1376 = vshrl.u32 %v1375, 7
        %v1377 = vsub.s32 %v1374, %v1376
        %v1378 = vrot.slane %v1364, %v1377
        %v1379 = vcombine.low %v1343, %v1345
        %v1380 = vcombine.high %v1343, %v1345
        %v1382 = vunpack.c.l.s4 1983009808
        %v1383 = vunpack.c.0.s8 %v1382
        %v1384 = vlaneseq
        %v1385 = vshrl.u32 %v1384, 7
        %v1386 = vsub.s32 %v1383, %v1385
        %v1387 = vrot.slane %v1379, %v1386
        %v1389 = vunpack.c.l.s4 1983009808
        %v1390 = vunpack.c.0.s8 %v1389
        %v1391 = vlaneseq
        %v1392 = vshrl.u32 %v1391, 7
        %v1393 = vsub.s32 %v1390, %v1392
        %v1394 = vrot.slane %v1380, %v1393
        %v1395 = vcombine.low %v1344, %v1346
        %v1396 = vcombine.high %v1344, %v1346
        %v1398 = vunpack.c.l.s4 1983009808
        %v1399 = vunpack.c.0.s8 %v1398
        %v1400 = vlaneseq
        %v1401 = vshrl.u32 %v1400, 7
        %v1402 = vsub.s32 %v1399, %v1401
        %v1403 = vrot.slane %v1395, %v1402
        %v1405 = vunpack.c.l.s4 1983009808
        %v1406 = vunpack.c.0.s8 %v1405
        %v1407 = vlaneseq
        %v1408 = vshrl.u32 %v1407, 7
        %v1409 = vsub.s32 %v1406, %v1408
        %v1410 = vrot.slane %v1396, %v1409
        %v1411 = vcombine.low %v1355, %v1371
        %v1412 = vcombine.high %v1355, %v1371
        %v1414 = vunpack.c.l.s4 1934713408
        %v1415 = vunpack.c.0.s8 %v1414
        %v1416 = vlaneseq
        %v1417 = vshrl.u32 %v1416, 7
        %v1418 = vsub.s32 %v1415, %v1417
        %v1419 = vrot.slane %v1411, %v1418
        %v1421 = vunpack.c.l.s4 1934713408
        %v1422 = vunpack.c.0.s8 %v1421
        %v1423 = vlaneseq
        %v1424 = vshrl.u32 %v1423, 7
        %v1425 = vsub.s32 %v1422, %v1424
        %v1426 = vrot.slane %v1412, %v1425
        %v1427 = vcombine.low %v1362, %v1378
        %v1428 = vcombine.high %v1362, %v1378
        %v1430 = vunpack.c.l.s4 1934713408
        %v1431 = vunpack.c.0.s8 %v1430
        %v1432 = vlaneseq
        %v1433 = vshrl.u32 %v1432, 7
        %v1434 = vsub.s32 %v1431, %v1433
        %v1435 = vrot.slane %v1427, %v1434
        %v1437 = vunpack.c.l.s4 1934713408
        %v1438 = vunpack.c.0.s8 %v1437
        %v1439 = vlaneseq
        %v1440 = vshrl.u32 %v1439, 7
        %v1441 = vsub.s32 %v1438, %v1440
        %v1442 = vrot.slane %v1428, %v1441
        %v1443 = vcombine.low %v1387, %v1403
        %v1444 = vcombine.high %v1387, %v1403
        %v1446 = vunpack.c.l.s4 1934713408
        %v1447 = vunpack.c.0.s8 %v1446
        %v1448 = vlaneseq
        %v1449 = vshrl.u32 %v1448, 7
        %v1450 = vsub.s32 %v1447, %v1449
        %v1451 = vrot.slane %v1443, %v1450
        %v1453 = vunpack.c.l.s4 1934713408
        %v1454 = vunpack.c.0.s8 %v1453
        %v1455 = vlaneseq
        %v1456 = vshrl.u32 %v1455, 7
        %v1457 = vsub.s32 %v1454, %v1456
        %v1458 = vrot.slane %v1444, %v1457
        %v1459 = vcombine.low %v1394, %v1410
        %v1460 = vcombine.high %v1394, %v1410
        %v1462 = vunpack.c.l.s4 1934713408
        %v1463 = vunpack.c.0.s8 %v1462
        %v1464 = vlaneseq
        %v1465 = vshrl.u32 %v1464, 7
        %v1466 = vsub.s32 %v1463, %v1465
        %v1467 = vrot.slane %v1459, %v1466
        %v1469 = vunpack.c.l.s4 1934713408
        %v1470 = vunpack.c.0.s8 %v1469
        %v1471 = vlaneseq
        %v1472 = vshrl.u32 %v1471, 7
        %v1473 = vsub.s32 %v1470, %v1472
        %v1474 = vrot.slane %v1460, %v1473
        %v1475 = vcombine.low %v1419, %v1451
        %v1476 = vcombine.high %v1419, %v1451
        %v1477 = vcombine.low %v1426, %v1458
        %v1478 = vcombine.high %v1426, %v1458
        %v1479 = vcombine.low %v1435, %v1467
        %v1480 = vcombine.high %v1435, %v1467
        %v1481 = vcombine.low %v1442, %v1474
        %v1482 = vcombine.high %v1442, %v1474
        %vm1483 = vcmask 31744
        %v1485 = vsel %vm1483, %v800, 0
        %v1488 = vsel %vm1483, %v1179, 0
        %1490 = vmatprep.subr.mxu0 0.0
        %1491 = vmatpush1.xpose.msra.mxu0 %v1488
        %1492 = vmatprep.subr.mxu0 0.0
        %1493 = vmatpush1.xpose.msra.mxu0 0.0
        %1494 = vmatprep.subr.mxu0 0.0
        %1495 = vmatpush1.xpose.msra.mxu0 0.0
        %1496 = vmatprep.subr.mxu0 0.0
        %1497 = vmatpush1.xpose.msra.mxu0 0.0
        %1498 = vmatprep.subr.mxu0 0.0
        %1499 = vmatpush1.xpose.msra.mxu0 0.0
        %1500 = vmatprep.subr.mxu0 0.0
        %1501 = vmatpush1.xpose.msra.mxu0 0.0
        %1502 = vmatprep.subr.mxu0 0.0
        %1503 = vmatpush1.xpose.msra.mxu0 0.0
        %1504 = vmatprep.subr.mxu0 0.0
        %1505 = vmatpush1.xpose.msra.mxu0 0.0
        %1506 = vmatprep.subr.mxu0 0.0
        %1507 = vmatpush1.xpose.msra.mxu0 0.0
        %1508 = vmatprep.subr.mxu0 0.0
        %1509 = vmatpush1.xpose.msra.mxu0 0.0
        %1510 = vmatprep.subr.mxu0 0.0
        %1511 = vmatpush1.xpose.msra.mxu0 0.0
        %1512 = vmatprep.subr.mxu0 0.0
        %1513 = vmatpush1.xpose.msra.mxu0 0.0
        %1514 = vmatprep.subr.mxu0 0.0
        %1515 = vmatpush1.xpose.msra.mxu0 0.0
        %1516 = vmatprep.subr.mxu0 0.0
        %1517 = vmatpush1.xpose.msra.mxu0 0.0
        %1518 = vmatprep.subr.mxu0 0.0
        %1519 = vmatpush1.xpose.msra.mxu0 0.0
        %1520 = vmatprep.subr.mxu0 0.0
        %1521 = vmatpush1.xpose.msra.mxu0 0.0
        %1522 = vmatprep.subr.mxu0 0.0
        %1523 = vmatpush1.xpose.msra.mxu0 0.0
        %1524 = vmatprep.subr.mxu0 0.0
        %1525 = vmatpush1.xpose.msra.mxu0 0.0
        %1526 = vmatprep.subr.mxu0 0.0
        %1527 = vmatpush1.xpose.msra.mxu0 0.0
        %1528 = vmatprep.subr.mxu0 0.0
        %1529 = vmatpush1.xpose.msra.mxu0 0.0
        %1530 = vmatprep.subr.mxu0 0.0
        %1531 = vmatpush1.xpose.msra.mxu0 0.0
        %1532 = vmatprep.subr.mxu0 0.0
        %1533 = vmatpush1.xpose.msra.mxu0 0.0
        %1534 = vmatprep.subr.mxu0 0.0
        %1535 = vmatpush1.xpose.msra.mxu0 0.0
        %1536 = vmatprep.subr.mxu0 0.0
        %1537 = vmatpush1.xpose.msra.mxu0 0.0
        %1538 = vmatprep.subr.mxu0 0.0
        %1539 = vmatpush1.xpose.msra.mxu0 0.0
        %1540 = vmatprep.subr.mxu0 0.0
        %1541 = vmatpush1.xpose.msra.mxu0 0.0
        %1542 = vmatprep.subr.mxu0 0.0
        %1543 = vmatpush1.xpose.msra.mxu0 0.0
        %1544 = vmatprep.subr.mxu0 0.0
        %1545 = vmatpush1.xpose.msra.mxu0 0.0
        %1546 = vmatprep.subr.mxu0 0.0
        %1547 = vmatpush1.xpose.msra.mxu0 0.0
        %1548 = vmatprep.subr.mxu0 0.0
        %1549 = vmatpush1.xpose.msra.mxu0 0.0
        %1550 = vmatprep.subr.mxu0 0.0
        %1551 = vmatpush1.xpose.msra.mxu0 0.0
        %1552 = vmatprep.subr.mxu0 0.0
        %1553 = vmatpush1.xpose.msra.mxu0 0.0
        %1554 = vmatprep.mubr.f32.mxu0 0.0
        %1555 = vmatmul.mubr.f32.gmra.mrb[0].mxu0 %v1485
        %v1556 = vpop.f32.mrb[0].mxu0
        %v1557 = vadd.f32 0.0, %v1556
        %v1558 = vpop.f32.mrb[0].mxu0
        %1559 = vdwg.mxu0
        %v1561 = vsel %vm1483, %v801, 0
        %v1564 = vsel %vm1483, %v1180, 0
        %1566 = vmatprep.subr.mxu0 0.0
        %1567 = vmatpush1.xpose.msra.mxu0 %v1564
        %1568 = vmatprep.subr.mxu0 0.0
        %1569 = vmatpush1.xpose.msra.mxu0 0.0
        %1570 = vmatprep.subr.mxu0 0.0
        %1571 = vmatpush1.xpose.msra.mxu0 0.0
        %1572 = vmatprep.subr.mxu0 0.0
        %1573 = vmatpush1.xpose.msra.mxu0 0.0
        %1574 = vmatprep.subr.mxu0 0.0
        %1575 = vmatpush1.xpose.msra.mxu0 0.0
        %1576 = vmatprep.subr.mxu0 0.0
        %1577 = vmatpush1.xpose.msra.mxu0 0.0
        %1578 = vmatprep.subr.mxu0 0.0
        %1579 = vmatpush1.xpose.msra.mxu0 0.0
        %1580 = vmatprep.subr.mxu0 0.0
        %1581 = vmatpush1.xpose.msra.mxu0 0.0
        %1582 = vmatprep.subr.mxu0 0.0
        %1583 = vmatpush1.xpose.msra.mxu0 0.0
        %1584 = vmatprep.subr.mxu0 0.0
        %1585 = vmatpush1.xpose.msra.mxu0 0.0
        %1586 = vmatprep.subr.mxu0 0.0
        %1587 = vmatpush1.xpose.msra.mxu0 0.0
        %1588 = vmatprep.subr.mxu0 0.0
        %1589 = vmatpush1.xpose.msra.mxu0 0.0
        %1590 = vmatprep.subr.mxu0 0.0
        %1591 = vmatpush1.xpose.msra.mxu0 0.0
        %1592 = vmatprep.subr.mxu0 0.0
        %1593 = vmatpush1.xpose.msra.mxu0 0.0
        %1594 = vmatprep.subr.mxu0 0.0
        %1595 = vmatpush1.xpose.msra.mxu0 0.0
        %1596 = vmatprep.subr.mxu0 0.0
        %1597 = vmatpush1.xpose.msra.mxu0 0.0
        %1598 = vmatprep.subr.mxu0 0.0
        %1599 = vmatpush1.xpose.msra.mxu0 0.0
        %1600 = vmatprep.subr.mxu0 0.0
        %1601 = vmatpush1.xpose.msra.mxu0 0.0
        %1602 = vmatprep.subr.mxu0 0.0
        %1603 = vmatpush1.xpose.msra.mxu0 0.0
        %1604 = vmatprep.subr.mxu0 0.0
        %1605 = vmatpush1.xpose.msra.mxu0 0.0
        %1606 = vmatprep.subr.mxu0 0.0
        %1607 = vmatpush1.xpose.msra.mxu0 0.0
        %1608 = vmatprep.subr.mxu0 0.0
        %1609 = vmatpush1.xpose.msra.mxu0 0.0
        %1610 = vmatprep.subr.mxu0 0.0
        %1611 = vmatpush1.xpose.msra.mxu0 0.0
        %1612 = vmatprep.subr.mxu0 0.0
        %1613 = vmatpush1.xpose.msra.mxu0 0.0
        %1614 = vmatprep.subr.mxu0 0.0
        %1615 = vmatpush1.xpose.msra.mxu0 0.0
        %1616 = vmatprep.subr.mxu0 0.0
        %1617 = vmatpush1.xpose.msra.mxu0 0.0
        %1618 = vmatprep.subr.mxu0 0.0
        %1619 = vmatpush1.xpose.msra.mxu0 0.0
        %1620 = vmatprep.subr.mxu0 0.0
        %1621 = vmatpush1.xpose.msra.mxu0 0.0
        %1622 = vmatprep.subr.mxu0 0.0
        %1623 = vmatpush1.xpose.msra.mxu0 0.0
        %1624 = vmatprep.subr.mxu0 0.0
        %1625 = vmatpush1.xpose.msra.mxu0 0.0
        %1626 = vmatprep.subr.mxu0 0.0
        %1627 = vmatpush1.xpose.msra.mxu0 0.0
        %1628 = vmatprep.subr.mxu0 0.0
        %1629 = vmatpush1.xpose.msra.mxu0 0.0
        %1630 = vmatprep.mubr.f32.mxu0 0.0
        %1631 = vmatmul.mubr.f32.gmra.mrb[0].mxu0 %v1561
        %v1632 = vpop.f32.mrb[0].mxu0
        %v1633 = vadd.f32 0.0, %v1632
        %v1634 = vpop.f32.mrb[0].mxu0
        %1635 = vdwg.mxu0
        %v1637 = vsel %vm1483, %v802, 0
        %v1640 = vsel %vm1483, %v1181, 0
        %1642 = vmatprep.subr.mxu0 0.0
        %1643 = vmatpush1.xpose.msra.mxu0 %v1640
        %1644 = vmatprep.subr.mxu0 0.0
        %1645 = vmatpush1.xpose.msra.mxu0 0.0
        %1646 = vmatprep.subr.mxu0 0.0
        %1647 = vmatpush1.xpose.msra.mxu0 0.0
        %1648 = vmatprep.subr.mxu0 0.0
        %1649 = vmatpush1.xpose.msra.mxu0 0.0
        %1650 = vmatprep.subr.mxu0 0.0
        %1651 = vmatpush1.xpose.msra.mxu0 0.0
        %1652 = vmatprep.subr.mxu0 0.0
        %1653 = vmatpush1.xpose.msra.mxu0 0.0
        %1654 = vmatprep.subr.mxu0 0.0
        %1655 = vmatpush1.xpose.msra.mxu0 0.0
        %1656 = vmatprep.subr.mxu0 0.0
        %1657 = vmatpush1.xpose.msra.mxu0 0.0
        %1658 = vmatprep.subr.mxu0 0.0
        %1659 = vmatpush1.xpose.msra.mxu0 0.0
        %1660 = vmatprep.subr.mxu0 0.0
        %1661 = vmatpush1.xpose.msra.mxu0 0.0
        %1662 = vmatprep.subr.mxu0 0.0
        %1663 = vmatpush1.xpose.msra.mxu0 0.0
        %1664 = vmatprep.subr.mxu0 0.0
        %1665 = vmatpush1.xpose.msra.mxu0 0.0
        %1666 = vmatprep.subr.mxu0 0.0
        %1667 = vmatpush1.xpose.msra.mxu0 0.0
        %1668 = vmatprep.subr.mxu0 0.0
        %1669 = vmatpush1.xpose.msra.mxu0 0.0
        %1670 = vmatprep.subr.mxu0 0.0
        %1671 = vmatpush1.xpose.msra.mxu0 0.0
        %1672 = vmatprep.subr.mxu0 0.0
        %1673 = vmatpush1.xpose.msra.mxu0 0.0
        %1674 = vmatprep.subr.mxu0 0.0
        %1675 = vmatpush1.xpose.msra.mxu0 0.0
        %1676 = vmatprep.subr.mxu0 0.0
        %1677 = vmatpush1.xpose.msra.mxu0 0.0
        %1678 = vmatprep.subr.mxu0 0.0
        %1679 = vmatpush1.xpose.msra.mxu0 0.0
        %1680 = vmatprep.subr.mxu0 0.0
        %1681 = vmatpush1.xpose.msra.mxu0 0.0
        %1682 = vmatprep.subr.mxu0 0.0
        %1683 = vmatpush1.xpose.msra.mxu0 0.0
        %1684 = vmatprep.subr.mxu0 0.0
        %1685 = vmatpush1.xpose.msra.mxu0 0.0
        %1686 = vmatprep.subr.mxu0 0.0
        %1687 = vmatpush1.xpose.msra.mxu0 0.0
        %1688 = vmatprep.subr.mxu0 0.0
        %1689 = vmatpush1.xpose.msra.mxu0 0.0
        %1690 = vmatprep.subr.mxu0 0.0
        %1691 = vmatpush1.xpose.msra.mxu0 0.0
        %1692 = vmatprep.subr.mxu0 0.0
        %1693 = vmatpush1.xpose.msra.mxu0 0.0
        %1694 = vmatprep.subr.mxu0 0.0
        %1695 = vmatpush1.xpose.msra.mxu0 0.0
        %1696 = vmatprep.subr.mxu0 0.0
        %1697 = vmatpush1.xpose.msra.mxu0 0.0
        %1698 = vmatprep.subr.mxu0 0.0
        %1699 = vmatpush1.xpose.msra.mxu0 0.0
        %1700 = vmatprep.subr.mxu0 0.0
        %1701 = vmatpush1.xpose.msra.mxu0 0.0
        %1702 = vmatprep.subr.mxu0 0.0
        %1703 = vmatpush1.xpose.msra.mxu0 0.0
        %1704 = vmatprep.subr.mxu0 0.0
        %1705 = vmatpush1.xpose.msra.mxu0 0.0
        %1706 = vmatprep.mubr.f32.mxu0 0.0
        %1707 = vmatmul.mubr.f32.gmra.mrb[0].mxu0 %v1637
        %v1708 = vpop.f32.mrb[0].mxu0
        %v1709 = vadd.f32 0.0, %v1708
        %v1710 = vpop.f32.mrb[0].mxu0
        %1711 = vdwg.mxu0
        %v1713 = vsel %vm1483, %v803, 0
        %v1716 = vsel %vm1483, %v1182, 0
        %1718 = vmatprep.subr.mxu0 0.0
        %1719 = vmatpush1.xpose.msra.mxu0 %v1716
        %1720 = vmatprep.subr.mxu0 0.0
        %1721 = vmatpush1.xpose.msra.mxu0 0.0
        %1722 = vmatprep.subr.mxu0 0.0
        %1723 = vmatpush1.xpose.msra.mxu0 0.0
        %1724 = vmatprep.subr.mxu0 0.0
        %1725 = vmatpush1.xpose.msra.mxu0 0.0
        %1726 = vmatprep.subr.mxu0 0.0
        %1727 = vmatpush1.xpose.msra.mxu0 0.0
        %1728 = vmatprep.subr.mxu0 0.0
        %1729 = vmatpush1.xpose.msra.mxu0 0.0
        %1730 = vmatprep.subr.mxu0 0.0
        %1731 = vmatpush1.xpose.msra.mxu0 0.0
        %1732 = vmatprep.subr.mxu0 0.0
        %1733 = vmatpush1.xpose.msra.mxu0 0.0
        %1734 = vmatprep.subr.mxu0 0.0
        %1735 = vmatpush1.xpose.msra.mxu0 0.0
        %1736 = vmatprep.subr.mxu0 0.0
        %1737 = vmatpush1.xpose.msra.mxu0 0.0
        %1738 = vmatprep.subr.mxu0 0.0
        %1739 = vmatpush1.xpose.msra.mxu0 0.0
        %1740 = vmatprep.subr.mxu0 0.0
        %1741 = vmatpush1.xpose.msra.mxu0 0.0
        %1742 = vmatprep.subr.mxu0 0.0
        %1743 = vmatpush1.xpose.msra.mxu0 0.0
        %1744 = vmatprep.subr.mxu0 0.0
        %1745 = vmatpush1.xpose.msra.mxu0 0.0
        %1746 = vmatprep.subr.mxu0 0.0
        %1747 = vmatpush1.xpose.msra.mxu0 0.0
        %1748 = vmatprep.subr.mxu0 0.0
        %1749 = vmatpush1.xpose.msra.mxu0 0.0
        %1750 = vmatprep.subr.mxu0 0.0
        %1751 = vmatpush1.xpose.msra.mxu0 0.0
        %1752 = vmatprep.subr.mxu0 0.0
        %1753 = vmatpush1.xpose.msra.mxu0 0.0
        %1754 = vmatprep.subr.mxu0 0.0
        %1755 = vmatpush1.xpose.msra.mxu0 0.0
        %1756 = vmatprep.subr.mxu0 0.0
        %1757 = vmatpush1.xpose.msra.mxu0 0.0
        %1758 = vmatprep.subr.mxu0 0.0
        %1759 = vmatpush1.xpose.msra.mxu0 0.0
        %1760 = vmatprep.subr.mxu0 0.0
        %1761 = vmatpush1.xpose.msra.mxu0 0.0
        %1762 = vmatprep.subr.mxu0 0.0
        %1763 = vmatpush1.xpose.msra.mxu0 0.0
        %1764 = vmatprep.subr.mxu0 0.0
        %1765 = vmatpush1.xpose.msra.mxu0 0.0
        %1766 = vmatprep.subr.mxu0 0.0
        %1767 = vmatpush1.xpose.msra.mxu0 0.0
        %1768 = vmatprep.subr.mxu0 0.0
        %1769 = vmatpush1.xpose.msra.mxu0 0.0
        %1770 = vmatprep.subr.mxu0 0.0
        %1771 = vmatpush1.xpose.msra.mxu0 0.0
        %1772 = vmatprep.subr.mxu0 0.0
        %1773 = vmatpush1.xpose.msra.mxu0 0.0
        %1774 = vmatprep.subr.mxu0 0.0
        %1775 = vmatpush1.xpose.msra.mxu0 0.0
        %1776 = vmatprep.subr.mxu0 0.0
        %1777 = vmatpush1.xpose.msra.mxu0 0.0
        %1778 = vmatprep.subr.mxu0 0.0
        %1779 = vmatpush1.xpose.msra.mxu0 0.0
        %1780 = vmatprep.subr.mxu0 0.0
        %1781 = vmatpush1.xpose.msra.mxu0 0.0
        %1782 = vmatprep.mubr.f32.mxu0 0.0
        %1783 = vmatmul.mubr.f32.gmra.mrb[0].mxu0 %v1713
        %v1784 = vpop.f32.mrb[0].mxu0
        %v1785 = vadd.f32 0.0, %v1784
        %v1786 = vpop.f32.mrb[0].mxu0
        %1787 = vdwg.mxu0
        %v1789 = vsel %vm1483, %v804, 0
        %v1792 = vsel %vm1483, %v1183, 0
        %1794 = vmatprep.subr.mxu0 0.0
        %1795 = vmatpush1.xpose.msra.mxu0 %v1792
        %1796 = vmatprep.subr.mxu0 0.0
        %1797 = vmatpush1.xpose.msra.mxu0 0.0
        %1798 = vmatprep.subr.mxu0 0.0
        %1799 = vmatpush1.xpose.msra.mxu0 0.0
        %1800 = vmatprep.subr.mxu0 0.0
        %1801 = vmatpush1.xpose.msra.mxu0 0.0
        %1802 = vmatprep.subr.mxu0 0.0
        %1803 = vmatpush1.xpose.msra.mxu0 0.0
        %1804 = vmatprep.subr.mxu0 0.0
        %1805 = vmatpush1.xpose.msra.mxu0 0.0
        %1806 = vmatprep.subr.mxu0 0.0
        %1807 = vmatpush1.xpose.msra.mxu0 0.0
        %1808 = vmatprep.subr.mxu0 0.0
        %1809 = vmatpush1.xpose.msra.mxu0 0.0
        %1810 = vmatprep.subr.mxu0 0.0
        %1811 = vmatpush1.xpose.msra.mxu0 0.0
        %1812 = vmatprep.subr.mxu0 0.0
        %1813 = vmatpush1.xpose.msra.mxu0 0.0
        %1814 = vmatprep.subr.mxu0 0.0
        %1815 = vmatpush1.xpose.msra.mxu0 0.0
        %1816 = vmatprep.subr.mxu0 0.0
        %1817 = vmatpush1.xpose.msra.mxu0 0.0
        %1818 = vmatprep.subr.mxu0 0.0
        %1819 = vmatpush1.xpose.msra.mxu0 0.0
        %1820 = vmatprep.subr.mxu0 0.0
        %1821 = vmatpush1.xpose.msra.mxu0 0.0
        %1822 = vmatprep.subr.mxu0 0.0
        %1823 = vmatpush1.xpose.msra.mxu0 0.0
        %1824 = vmatprep.subr.mxu0 0.0
        %1825 = vmatpush1.xpose.msra.mxu0 0.0
        %1826 = vmatprep.subr.mxu0 0.0
        %1827 = vmatpush1.xpose.msra.mxu0 0.0
        %1828 = vmatprep.subr.mxu0 0.0
        %1829 = vmatpush1.xpose.msra.mxu0 0.0
        %1830 = vmatprep.subr.mxu0 0.0
        %1831 = vmatpush1.xpose.msra.mxu0 0.0
        %1832 = vmatprep.subr.mxu0 0.0
        %1833 = vmatpush1.xpose.msra.mxu0 0.0
        %1834 = vmatprep.subr.mxu0 0.0
        %1835 = vmatpush1.xpose.msra.mxu0 0.0
        %1836 = vmatprep.subr.mxu0 0.0
        %1837 = vmatpush1.xpose.msra.mxu0 0.0
        %1838 = vmatprep.subr.mxu0 0.0
        %1839 = vmatpush1.xpose.msra.mxu0 0.0
        %1840 = vmatprep.subr.mxu0 0.0
        %1841 = vmatpush1.xpose.msra.mxu0 0.0
        %1842 = vmatprep.subr.mxu0 0.0
        %1843 = vmatpush1.xpose.msra.mxu0 0.0
        %1844 = vmatprep.subr.mxu0 0.0
        %1845 = vmatpush1.xpose.msra.mxu0 0.0
        %1846 = vmatprep.subr.mxu0 0.0
        %1847 = vmatpush1.xpose.msra.mxu0 0.0
        %1848 = vmatprep.subr.mxu0 0.0
        %1849 = vmatpush1.xpose.msra.mxu0 0.0
        %1850 = vmatprep.subr.mxu0 0.0
        %1851 = vmatpush1.xpose.msra.mxu0 0.0
        %1852 = vmatprep.subr.mxu0 0.0
        %1853 = vmatpush1.xpose.msra.mxu0 0.0
        %1854 = vmatprep.subr.mxu0 0.0
        %1855 = vmatpush1.xpose.msra.mxu0 0.0
        %1856 = vmatprep.subr.mxu0 0.0
        %1857 = vmatpush1.xpose.msra.mxu0 0.0
        %1858 = vmatprep.mubr.f32.mxu0 0.0
        %1859 = vmatmul.mubr.f32.gmra.mrb[0].mxu0 %v1789
        %v1860 = vpop.f32.mrb[0].mxu0
        %v1861 = vadd.f32 0.0, %v1860
        %v1862 = vpop.f32.mrb[0].mxu0
        %1863 = vdwg.mxu0
        %v1865 = vsel %vm1483, %v805, 0
        %v1868 = vsel %vm1483, %v1184, 0
        %1870 = vmatprep.subr.mxu0 0.0
        %1871 = vmatpush1.xpose.msra.mxu0 %v1868
        %1872 = vmatprep.subr.mxu0 0.0
        %1873 = vmatpush1.xpose.msra.mxu0 0.0
        %1874 = vmatprep.subr.mxu0 0.0
        %1875 = vmatpush1.xpose.msra.mxu0 0.0
        %1876 = vmatprep.subr.mxu0 0.0
        %1877 = vmatpush1.xpose.msra.mxu0 0.0
        %1878 = vmatprep.subr.mxu0 0.0
        %1879 = vmatpush1.xpose.msra.mxu0 0.0
        %1880 = vmatprep.subr.mxu0 0.0
        %1881 = vmatpush1.xpose.msra.mxu0 0.0
        %1882 = vmatprep.subr.mxu0 0.0
        %1883 = vmatpush1.xpose.msra.mxu0 0.0
        %1884 = vmatprep.subr.mxu0 0.0
        %1885 = vmatpush1.xpose.msra.mxu0 0.0
        %1886 = vmatprep.subr.mxu0 0.0
        %1887 = vmatpush1.xpose.msra.mxu0 0.0
        %1888 = vmatprep.subr.mxu0 0.0
        %1889 = vmatpush1.xpose.msra.mxu0 0.0
        %1890 = vmatprep.subr.mxu0 0.0
        %1891 = vmatpush1.xpose.msra.mxu0 0.0
        %1892 = vmatprep.subr.mxu0 0.0
        %1893 = vmatpush1.xpose.msra.mxu0 0.0
        %1894 = vmatprep.subr.mxu0 0.0
        %1895 = vmatpush1.xpose.msra.mxu0 0.0
        %1896 = vmatprep.subr.mxu0 0.0
        %1897 = vmatpush1.xpose.msra.mxu0 0.0
        %1898 = vmatprep.subr.mxu0 0.0
        %1899 = vmatpush1.xpose.msra.mxu0 0.0
        %1900 = vmatprep.subr.mxu0 0.0
        %1901 = vmatpush1.xpose.msra.mxu0 0.0
        %1902 = vmatprep.subr.mxu0 0.0
        %1903 = vmatpush1.xpose.msra.mxu0 0.0
        %1904 = vmatprep.subr.mxu0 0.0
        %1905 = vmatpush1.xpose.msra.mxu0 0.0
        %1906 = vmatprep.subr.mxu0 0.0
        %1907 = vmatpush1.xpose.msra.mxu0 0.0
        %1908 = vmatprep.subr.mxu0 0.0
        %1909 = vmatpush1.xpose.msra.mxu0 0.0
        %1910 = vmatprep.subr.mxu0 0.0
        %1911 = vmatpush1.xpose.msra.mxu0 0.0
        %1912 = vmatprep.subr.mxu0 0.0
        %1913 = vmatpush1.xpose.msra.mxu0 0.0
        %1914 = vmatprep.subr.mxu0 0.0
        %1915 = vmatpush1.xpose.msra.mxu0 0.0
        %1916 = vmatprep.subr.mxu0 0.0
        %1917 = vmatpush1.xpose.msra.mxu0 0.0
        %1918 = vmatprep.subr.mxu0 0.0
        %1919 = vmatpush1.xpose.msra.mxu0 0.0
        %1920 = vmatprep.subr.mxu0 0.0
        %1921 = vmatpush1.xpose.msra.mxu0 0.0
        %1922 = vmatprep.subr.mxu0 0.0
        %1923 = vmatpush1.xpose.msra.mxu0 0.0
        %1924 = vmatprep.subr.mxu0 0.0
        %1925 = vmatpush1.xpose.msra.mxu0 0.0
        %1926 = vmatprep.subr.mxu0 0.0
        %1927 = vmatpush1.xpose.msra.mxu0 0.0
        %1928 = vmatprep.subr.mxu0 0.0
        %1929 = vmatpush1.xpose.msra.mxu0 0.0
        %1930 = vmatprep.subr.mxu0 0.0
        %1931 = vmatpush1.xpose.msra.mxu0 0.0
        %1932 = vmatprep.subr.mxu0 0.0
        %1933 = vmatpush1.xpose.msra.mxu0 0.0
        %1934 = vmatprep.mubr.f32.mxu0 0.0
        %1935 = vmatmul.mubr.f32.gmra.mrb[0].mxu0 %v1865
        %v1936 = vpop.f32.mrb[0].mxu0
        %v1937 = vadd.f32 0.0, %v1936
        %v1938 = vpop.f32.mrb[0].mxu0
        %1939 = vdwg.mxu0
        %v1941 = vsel %vm1483, %v806, 0
        %v1944 = vsel %vm1483, %v1185, 0
        %1946 = vmatprep.subr.mxu0 0.0
        %1947 = vmatpush1.xpose.msra.mxu0 %v1944
        %1948 = vmatprep.subr.mxu0 0.0
        %1949 = vmatpush1.xpose.msra.mxu0 0.0
        %1950 = vmatprep.subr.mxu0 0.0
        %1951 = vmatpush1.xpose.msra.mxu0 0.0
        %1952 = vmatprep.subr.mxu0 0.0
        %1953 = vmatpush1.xpose.msra.mxu0 0.0
        %1954 = vmatprep.subr.mxu0 0.0
        %1955 = vmatpush1.xpose.msra.mxu0 0.0
        %1956 = vmatprep.subr.mxu0 0.0
        %1957 = vmatpush1.xpose.msra.mxu0 0.0
        %1958 = vmatprep.subr.mxu0 0.0
        %1959 = vmatpush1.xpose.msra.mxu0 0.0
        %1960 = vmatprep.subr.mxu0 0.0
        %1961 = vmatpush1.xpose.msra.mxu0 0.0
        %1962 = vmatprep.subr.mxu0 0.0
        %1963 = vmatpush1.xpose.msra.mxu0 0.0
        %1964 = vmatprep.subr.mxu0 0.0
        %1965 = vmatpush1.xpose.msra.mxu0 0.0
        %1966 = vmatprep.subr.mxu0 0.0
        %1967 = vmatpush1.xpose.msra.mxu0 0.0
        %1968 = vmatprep.subr.mxu0 0.0
        %1969 = vmatpush1.xpose.msra.mxu0 0.0
        %1970 = vmatprep.subr.mxu0 0.0
        %1971 = vmatpush1.xpose.msra.mxu0 0.0
        %1972 = vmatprep.subr.mxu0 0.0
        %1973 = vmatpush1.xpose.msra.mxu0 0.0
        %1974 = vmatprep.subr.mxu0 0.0
        %1975 = vmatpush1.xpose.msra.mxu0 0.0
        %1976 = vmatprep.subr.mxu0 0.0
        %1977 = vmatpush1.xpose.msra.mxu0 0.0
        %1978 = vmatprep.subr.mxu0 0.0
        %1979 = vmatpush1.xpose.msra.mxu0 0.0
        %1980 = vmatprep.subr.mxu0 0.0
        %1981 = vmatpush1.xpose.msra.mxu0 0.0
        %1982 = vmatprep.subr.mxu0 0.0
        %1983 = vmatpush1.xpose.msra.mxu0 0.0
        %1984 = vmatprep.subr.mxu0 0.0
        %1985 = vmatpush1.xpose.msra.mxu0 0.0
        %1986 = vmatprep.subr.mxu0 0.0
        %1987 = vmatpush1.xpose.msra.mxu0 0.0
        %1988 = vmatprep.subr.mxu0 0.0
        %1989 = vmatpush1.xpose.msra.mxu0 0.0
        %1990 = vmatprep.subr.mxu0 0.0
        %1991 = vmatpush1.xpose.msra.mxu0 0.0
        %1992 = vmatprep.subr.mxu0 0.0
        %1993 = vmatpush1.xpose.msra.mxu0 0.0
        %1994 = vmatprep.subr.mxu0 0.0
        %1995 = vmatpush1.xpose.msra.mxu0 0.0
        %1996 = vmatprep.subr.mxu0 0.0
        %1997 = vmatpush1.xpose.msra.mxu0 0.0
        %1998 = vmatprep.subr.mxu0 0.0
        %1999 = vmatpush1.xpose.msra.mxu0 0.0
        %2000 = vmatprep.subr.mxu0 0.0
        %2001 = vmatpush1.xpose.msra.mxu0 0.0
        %2002 = vmatprep.subr.mxu0 0.0
        %2003 = vmatpush1.xpose.msra.mxu0 0.0
        %2004 = vmatprep.subr.mxu0 0.0
        %2005 = vmatpush1.xpose.msra.mxu0 0.0
        %2006 = vmatprep.subr.mxu0 0.0
        %2007 = vmatpush1.xpose.msra.mxu0 0.0
        %2008 = vmatprep.subr.mxu0 0.0
        %2009 = vmatpush1.xpose.msra.mxu0 0.0
        %2010 = vmatprep.mubr.f32.mxu0 0.0
        %2011 = vmatmul.mubr.f32.gmra.mrb[0].mxu0 %v1941
        %v2012 = vpop.f32.mrb[0].mxu0
        %v2013 = vadd.f32 0.0, %v2012
        %v2014 = vpop.f32.mrb[0].mxu0
        %2015 = vdwg.mxu0
        %v2017 = vsel %vm1483, %v807, 0
        %v2020 = vsel %vm1483, %v1186, 0
        %2022 = vmatprep.subr.mxu0 0.0
        %2023 = vmatpush1.xpose.msra.mxu0 %v2020
        %2024 = vmatprep.subr.mxu0 0.0
        %2025 = vmatpush1.xpose.msra.mxu0 0.0
        %2026 = vmatprep.subr.mxu0 0.0
        %2027 = vmatpush1.xpose.msra.mxu0 0.0
        %2028 = vmatprep.subr.mxu0 0.0
        %2029 = vmatpush1.xpose.msra.mxu0 0.0
        %2030 = vmatprep.subr.mxu0 0.0
        %2031 = vmatpush1.xpose.msra.mxu0 0.0
        %2032 = vmatprep.subr.mxu0 0.0
        %2033 = vmatpush1.xpose.msra.mxu0 0.0
        %2034 = vmatprep.subr.mxu0 0.0
        %2035 = vmatpush1.xpose.msra.mxu0 0.0
        %2036 = vmatprep.subr.mxu0 0.0
        %2037 = vmatpush1.xpose.msra.mxu0 0.0
        %2038 = vmatprep.subr.mxu0 0.0
        %2039 = vmatpush1.xpose.msra.mxu0 0.0
        %2040 = vmatprep.subr.mxu0 0.0
        %2041 = vmatpush1.xpose.msra.mxu0 0.0
        %2042 = vmatprep.subr.mxu0 0.0
        %2043 = vmatpush1.xpose.msra.mxu0 0.0
        %2044 = vmatprep.subr.mxu0 0.0
        %2045 = vmatpush1.xpose.msra.mxu0 0.0
        %2046 = vmatprep.subr.mxu0 0.0
        %2047 = vmatpush1.xpose.msra.mxu0 0.0
        %2048 = vmatprep.subr.mxu0 0.0
        %2049 = vmatpush1.xpose.msra.mxu0 0.0
        %2050 = vmatprep.subr.mxu0 0.0
        %2051 = vmatpush1.xpose.msra.mxu0 0.0
        %2052 = vmatprep.subr.mxu0 0.0
        %2053 = vmatpush1.xpose.msra.mxu0 0.0
        %2054 = vmatprep.subr.mxu0 0.0
        %2055 = vmatpush1.xpose.msra.mxu0 0.0
        %2056 = vmatprep.subr.mxu0 0.0
        %2057 = vmatpush1.xpose.msra.mxu0 0.0
        %2058 = vmatprep.subr.mxu0 0.0
        %2059 = vmatpush1.xpose.msra.mxu0 0.0
        %2060 = vmatprep.subr.mxu0 0.0
        %2061 = vmatpush1.xpose.msra.mxu0 0.0
        %2062 = vmatprep.subr.mxu0 0.0
        %2063 = vmatpush1.xpose.msra.mxu0 0.0
        %2064 = vmatprep.subr.mxu0 0.0
        %2065 = vmatpush1.xpose.msra.mxu0 0.0
        %2066 = vmatprep.subr.mxu0 0.0
        %2067 = vmatpush1.xpose.msra.mxu0 0.0
        %2068 = vmatprep.subr.mxu0 0.0
        %2069 = vmatpush1.xpose.msra.mxu0 0.0
        %2070 = vmatprep.subr.mxu0 0.0
        %2071 = vmatpush1.xpose.msra.mxu0 0.0
        %2072 = vmatprep.subr.mxu0 0.0
        %2073 = vmatpush1.xpose.msra.mxu0 0.0
        %2074 = vmatprep.subr.mxu0 0.0
        %2075 = vmatpush1.xpose.msra.mxu0 0.0
        %2076 = vmatprep.subr.mxu0 0.0
        %2077 = vmatpush1.xpose.msra.mxu0 0.0
        %2078 = vmatprep.subr.mxu0 0.0
        %2079 = vmatpush1.xpose.msra.mxu0 0.0
        %2080 = vmatprep.subr.mxu0 0.0
        %2081 = vmatpush1.xpose.msra.mxu0 0.0
        %2082 = vmatprep.subr.mxu0 0.0
        %2083 = vmatpush1.xpose.msra.mxu0 0.0
        %2084 = vmatprep.subr.mxu0 0.0
        %2085 = vmatpush1.xpose.msra.mxu0 0.0
        %2086 = vmatprep.mubr.f32.mxu0 0.0
        %2087 = vmatmul.mubr.f32.gmra.mrb[0].mxu0 %v2017
        %v2088 = vpop.f32.mrb[0].mxu0
        %v2089 = vadd.f32 0.0, %v2088
        %v2090 = vpop.f32.mrb[0].mxu0
        %2091 = vdwg.mxu0
        %vm2092 = vcmask 64512
        %v2093 = vsel %vm2092, %v1557, -inf
        %2094 = vmax.xlane.f32.xlu0 %v2093
        %v2095 = vpop.xlane.xlu0 %2094
        %v2096 = vsel %vm2092, %v1633, -inf
        %2097 = vmax.xlane.f32.xlu0 %v2096
        %v2098 = vpop.xlane.xlu0 %2097
        %v2099 = vsel %vm2092, %v1709, -inf
        %2100 = vmax.xlane.f32.xlu0 %v2099
        %v2101 = vpop.xlane.xlu0 %2100
        %v2102 = vsel %vm2092, %v1785, -inf
        %2103 = vmax.xlane.f32.xlu0 %v2102
        %v2104 = vpop.xlane.xlu0 %2103
        %v2105 = vsel %vm2092, %v1861, -inf
        %2106 = vmax.xlane.f32.xlu0 %v2105
        %v2107 = vpop.xlane.xlu0 %2106
        %v2108 = vsel %vm2092, %v1937, -inf
        %2109 = vmax.xlane.f32.xlu0 %v2108
        %v2110 = vpop.xlane.xlu0 %2109
        %v2111 = vsel %vm2092, %v2013, -inf
        %2112 = vmax.xlane.f32.xlu0 %v2111
        %v2113 = vpop.xlane.xlu0 %2112
        %v2114 = vsel %vm2092, %v2089, -inf
        %2115 = vmax.xlane.f32.xlu0 %v2114
        %v2116 = vpop.xlane.xlu0 %2115
        %v2117 = vsub.f32 %v1557, %v2095
        %v2118 = vsub.f32 %v1633, %v2098
        %v2119 = vsub.f32 %v1709, %v2101
        %v2120 = vsub.f32 %v1785, %v2104
        %v2121 = vsub.f32 %v1861, %v2107
        %v2122 = vsub.f32 %v1937, %v2110
        %v2123 = vsub.f32 %v2013, %v2113
        %v2124 = vsub.f32 %v2089, %v2116
        %v2125 = vmul.f32 %v2117, 1.442695
        %v2126 = vpow.pop %v2125
        %v2127 = vmul.f32 %v2118, 1.442695
        %v2128 = vpow.pop %v2127
        %v2129 = vmul.f32 %v2119, 1.442695
        %v2130 = vpow.pop %v2129
        %v2131 = vmul.f32 %v2120, 1.442695
        %v2132 = vpow.pop %v2131
        %v2133 = vmul.f32 %v2121, 1.442695
        %v2134 = vpow.pop %v2133
        %v2135 = vmul.f32 %v2122, 1.442695
        %v2136 = vpow.pop %v2135
        %v2137 = vmul.f32 %v2123, 1.442695
        %v2138 = vpow.pop %v2137
        %v2139 = vmul.f32 %v2124, 1.442695
        %v2140 = vpow.pop %v2139
        %v2141 = vsel %vm2092, %v2126, 0.0
        %2142 = vadd.xlane.f32.xlu0 %v2141
        %v2143 = vpop.xlane.xlu0 %2142
        %v2144 = vsel %vm2092, %v2128, 0.0
        %2145 = vadd.xlane.f32.xlu0 %v2144
        %v2146 = vpop.xlane.xlu0 %2145
        %v2147 = vsel %vm2092, %v2130, 0.0
        %2148 = vadd.xlane.f32.xlu0 %v2147
        %v2149 = vpop.xlane.xlu0 %2148
        %v2150 = vsel %vm2092, %v2132, 0.0
        %2151 = vadd.xlane.f32.xlu0 %v2150
        %v2152 = vpop.xlane.xlu0 %2151
        %v2153 = vsel %vm2092, %v2134, 0.0
        %2154 = vadd.xlane.f32.xlu0 %v2153
        %v2155 = vpop.xlane.xlu0 %2154
        %v2156 = vsel %vm2092, %v2136, 0.0
        %2157 = vadd.xlane.f32.xlu0 %v2156
        %v2158 = vpop.xlane.xlu0 %2157
        %v2159 = vsel %vm2092, %v2138, 0.0
        %2160 = vadd.xlane.f32.xlu0 %v2159
        %v2161 = vpop.xlane.xlu0 %2160
        %v2162 = vsel %vm2092, %v2140, 0.0
        %2163 = vadd.xlane.f32.xlu0 %v2162
        %v2164 = vpop.xlane.xlu0 %2163
        %v2166 = vsel %vm2092, %v2126, 0
        %2168 = vmatprep.subr.mxu0 0.0
        %2169 = vmatpush1.msra.mxu0 %v1475
        %2170 = vmatprep.subr.mxu0 0.0
        %2171 = vmatpush1.msra.mxu0 0.0
        %2172 = vmatprep.subr.mxu0 0.0
        %2173 = vmatpush1.msra.mxu0 0.0
        %2174 = vmatprep.subr.mxu0 0.0
        %2175 = vmatpush1.msra.mxu0 0.0
        %2176 = vmatprep.subr.mxu0 0.0
        %2177 = vmatpush1.msra.mxu0 0.0
        %2178 = vmatprep.subr.mxu0 0.0
        %2179 = vmatpush1.msra.mxu0 0.0
        %2180 = vmatprep.subr.mxu0 0.0
        %2181 = vmatpush1.msra.mxu0 0.0
        %2182 = vmatprep.subr.mxu0 0.0
        %2183 = vmatpush1.msra.mxu0 0.0
        %2184 = vmatprep.subr.mxu0 0.0
        %2185 = vmatpush1.msra.mxu0 0.0
        %2186 = vmatprep.subr.mxu0 0.0
        %2187 = vmatpush1.msra.mxu0 0.0
        %2188 = vmatprep.subr.mxu0 0.0
        %2189 = vmatpush1.msra.mxu0 0.0
        %2190 = vmatprep.subr.mxu0 0.0
        %2191 = vmatpush1.msra.mxu0 0.0
        %2192 = vmatprep.subr.mxu0 0.0
        %2193 = vmatpush1.msra.mxu0 0.0
        %2194 = vmatprep.subr.mxu0 0.0
        %2195 = vmatpush1.msra.mxu0 0.0
        %2196 = vmatprep.subr.mxu0 0.0
        %2197 = vmatpush1.msra.mxu0 0.0
        %2198 = vmatprep.subr.mxu0 0.0
        %2199 = vmatpush1.msra.mxu0 0.0
        %2200 = vmatprep.subr.mxu0 0.0
        %2201 = vmatpush1.msra.mxu0 0.0
        %2202 = vmatprep.subr.mxu0 0.0
        %2203 = vmatpush1.msra.mxu0 0.0
        %2204 = vmatprep.subr.mxu0 0.0
        %2205 = vmatpush1.msra.mxu0 0.0
        %2206 = vmatprep.subr.mxu0 0.0
        %2207 = vmatpush1.msra.mxu0 0.0
        %2208 = vmatprep.subr.mxu0 0.0
        %2209 = vmatpush1.msra.mxu0 0.0
        %2210 = vmatprep.subr.mxu0 0.0
        %2211 = vmatpush1.msra.mxu0 0.0
        %2212 = vmatprep.subr.mxu0 0.0
        %2213 = vmatpush1.msra.mxu0 0.0
        %2214 = vmatprep.subr.mxu0 0.0
        %2215 = vmatpush1.msra.mxu0 0.0
        %2216 = vmatprep.subr.mxu0 0.0
        %2217 = vmatpush1.msra.mxu0 0.0
        %2218 = vmatprep.subr.mxu0 0.0
        %2219 = vmatpush1.msra.mxu0 0.0
        %2220 = vmatprep.subr.mxu0 0.0
        %2221 = vmatpush1.msra.mxu0 0.0
        %2222 = vmatprep.subr.mxu0 0.0
        %2223 = vmatpush1.msra.mxu0 0.0
        %2224 = vmatprep.subr.mxu0 0.0
        %2225 = vmatpush1.msra.mxu0 0.0
        %2226 = vmatprep.subr.mxu0 0.0
        %2227 = vmatpush1.msra.mxu0 0.0
        %2228 = vmatprep.subr.mxu0 0.0
        %2229 = vmatpush1.msra.mxu0 0.0
        %2230 = vmatprep.subr.mxu0 0.0
        %2231 = vmatpush1.msra.mxu0 0.0
        %2232 = vmatprep.mubr.f32.mxu0 0.0
        %2233 = vmatmul.mubr.f32.gmra.mrb[0].mxu0 %v2166
        %v2234 = vpop.f32.mrb[0].mxu0
        %v2235 = vadd.f32 0.0, %v2234
        %v2236 = vpop.f32.mrb[0].mxu0
        %2237 = vdwg.mxu0
        %v2239 = vsel %vm2092, %v2128, 0
        %2241 = vmatprep.subr.mxu0 0.0
        %2242 = vmatpush1.msra.mxu0 %v1476
        %2243 = vmatprep.subr.mxu0 0.0
        %2244 = vmatpush1.msra.mxu0 0.0
        %2245 = vmatprep.subr.mxu0 0.0
        %2246 = vmatpush1.msra.mxu0 0.0
        %2247 = vmatprep.subr.mxu0 0.0
        %2248 = vmatpush1.msra.mxu0 0.0
        %2249 = vmatprep.subr.mxu0 0.0
        %2250 = vmatpush1.msra.mxu0 0.0
        %2251 = vmatprep.subr.mxu0 0.0
        %2252 = vmatpush1.msra.mxu0 0.0
        %2253 = vmatprep.subr.mxu0 0.0
        %2254 = vmatpush1.msra.mxu0 0.0
        %2255 = vmatprep.subr.mxu0 0.0
        %2256 = vmatpush1.msra.mxu0 0.0
        %2257 = vmatprep.subr.mxu0 0.0
        %2258 = vmatpush1.msra.mxu0 0.0
        %2259 = vmatprep.subr.mxu0 0.0
        %2260 = vmatpush1.msra.mxu0 0.0
        %2261 = vmatprep.subr.mxu0 0.0
        %2262 = vmatpush1.msra.mxu0 0.0
        %2263 = vmatprep.subr.mxu0 0.0
        %2264 = vmatpush1.msra.mxu0 0.0
        %2265 = vmatprep.subr.mxu0 0.0
        %2266 = vmatpush1.msra.mxu0 0.0
        %2267 = vmatprep.subr.mxu0 0.0
        %2268 = vmatpush1.msra.mxu0 0.0
        %2269 = vmatprep.subr.mxu0 0.0
        %2270 = vmatpush1.msra.mxu0 0.0
        %2271 = vmatprep.subr.mxu0 0.0
        %2272 = vmatpush1.msra.mxu0 0.0
        %2273 = vmatprep.subr.mxu0 0.0
        %2274 = vmatpush1.msra.mxu0 0.0
        %2275 = vmatprep.subr.mxu0 0.0
        %2276 = vmatpush1.msra.mxu0 0.0
        %2277 = vmatprep.subr.mxu0 0.0
        %2278 = vmatpush1.msra.mxu0 0.0
        %2279 = vmatprep.subr.mxu0 0.0
        %2280 = vmatpush1.msra.mxu0 0.0
        %2281 = vmatprep.subr.mxu0 0.0
        %2282 = vmatpush1.msra.mxu0 0.0
        %2283 = vmatprep.subr.mxu0 0.0
        %2284 = vmatpush1.msra.mxu0 0.0
        %2285 = vmatprep.subr.mxu0 0.0
        %2286 = vmatpush1.msra.mxu0 0.0
        %2287 = vmatprep.subr.mxu0 0.0
        %2288 = vmatpush1.msra.mxu0 0.0
        %2289 = vmatprep.subr.mxu0 0.0
        %2290 = vmatpush1.msra.mxu0 0.0
        %2291 = vmatprep.subr.mxu0 0.0
        %2292 = vmatpush1.msra.mxu0 0.0
        %2293 = vmatprep.subr.mxu0 0.0
        %2294 = vmatpush1.msra.mxu0 0.0
        %2295 = vmatprep.subr.mxu0 0.0
        %2296 = vmatpush1.msra.mxu0 0.0
        %2297 = vmatprep.subr.mxu0 0.0
        %2298 = vmatpush1.msra.mxu0 0.0
        %2299 = vmatprep.subr.mxu0 0.0
        %2300 = vmatpush1.msra.mxu0 0.0
        %2301 = vmatprep.subr.mxu0 0.0
        %2302 = vmatpush1.msra.mxu0 0.0
        %2303 = vmatprep.subr.mxu0 0.0
        %2304 = vmatpush1.msra.mxu0 0.0
        %2305 = vmatprep.mubr.f32.mxu0 0.0
        %2306 = vmatmul.mubr.f32.gmra.mrb[0].mxu0 %v2239
        %v2307 = vpop.f32.mrb[0].mxu0
        %v2308 = vadd.f32 0.0, %v2307
        %v2309 = vpop.f32.mrb[0].mxu0
        %2310 = vdwg.mxu0
        %v2312 = vsel %vm2092, %v2130, 0
        %2314 = vmatprep.subr.mxu0 0.0
        %2315 = vmatpush1.msra.mxu0 %v1477
        %2316 = vmatprep.subr.mxu0 0.0
        %2317 = vmatpush1.msra.mxu0 0.0
        %2318 = vmatprep.subr.mxu0 0.0
        %2319 = vmatpush1.msra.mxu0 0.0
        %2320 = vmatprep.subr.mxu0 0.0
        %2321 = vmatpush1.msra.mxu0 0.0
        %2322 = vmatprep.subr.mxu0 0.0
        %2323 = vmatpush1.msra.mxu0 0.0
        %2324 = vmatprep.subr.mxu0 0.0
        %2325 = vmatpush1.msra.mxu0 0.0
        %2326 = vmatprep.subr.mxu0 0.0
        %2327 = vmatpush1.msra.mxu0 0.0
        %2328 = vmatprep.subr.mxu0 0.0
        %2329 = vmatpush1.msra.mxu0 0.0
        %2330 = vmatprep.subr.mxu0 0.0
        %2331 = vmatpush1.msra.mxu0 0.0
        %2332 = vmatprep.subr.mxu0 0.0
        %2333 = vmatpush1.msra.mxu0 0.0
        %2334 = vmatprep.subr.mxu0 0.0
        %2335 = vmatpush1.msra.mxu0 0.0
        %2336 = vmatprep.subr.mxu0 0.0
        %2337 = vmatpush1.msra.mxu0 0.0
        %2338 = vmatprep.subr.mxu0 0.0
        %2339 = vmatpush1.msra.mxu0 0.0
        %2340 = vmatprep.subr.mxu0 0.0
        %2341 = vmatpush1.msra.mxu0 0.0
        %2342 = vmatprep.subr.mxu0 0.0
        %2343 = vmatpush1.msra.mxu0 0.0
        %2344 = vmatprep.subr.mxu0 0.0
        %2345 = vmatpush1.msra.mxu0 0.0
        %2346 = vmatprep.subr.mxu0 0.0
        %2347 = vmatpush1.msra.mxu0 0.0
        %2348 = vmatprep.subr.mxu0 0.0
        %2349 = vmatpush1.msra.mxu0 0.0
        %2350 = vmatprep.subr.mxu0 0.0
        %2351 = vmatpush1.msra.mxu0 0.0
        %2352 = vmatprep.subr.mxu0 0.0
        %2353 = vmatpush1.msra.mxu0 0.0
        %2354 = vmatprep.subr.mxu0 0.0
        %2355 = vmatpush1.msra.mxu0 0.0
        %2356 = vmatprep.subr.mxu0 0.0
        %2357 = vmatpush1.msra.mxu0 0.0
        %2358 = vmatprep.subr.mxu0 0.0
        %2359 = vmatpush1.msra.mxu0 0.0
        %2360 = vmatprep.subr.mxu0 0.0
        %2361 = vmatpush1.msra.mxu0 0.0
        %2362 = vmatprep.subr.mxu0 0.0
        %2363 = vmatpush1.msra.mxu0 0.0
        %2364 = vmatprep.subr.mxu0 0.0
        %2365 = vmatpush1.msra.mxu0 0.0
        %2366 = vmatprep.subr.mxu0 0.0
        %2367 = vmatpush1.msra.mxu0 0.0
        %2368 = vmatprep.subr.mxu0 0.0
        %2369 = vmatpush1.msra.mxu0 0.0
        %2370 = vmatprep.subr.mxu0 0.0
        %2371 = vmatpush1.msra.mxu0 0.0
        %2372 = vmatprep.subr.mxu0 0.0
        %2373 = vmatpush1.msra.mxu0 0.0
        %2374 = vmatprep.subr.mxu0 0.0
        %2375 = vmatpush1.msra.mxu0 0.0
        %2376 = vmatprep.subr.mxu0 0.0
        %2377 = vmatpush1.msra.mxu0 0.0
        %2378 = vmatprep.mubr.f32.mxu0 0.0
        %2379 = vmatmul.mubr.f32.gmra.mrb[0].mxu0 %v2312
        %v2380 = vpop.f32.mrb[0].mxu0
        %v2381 = vadd.f32 0.0, %v2380
        %v2382 = vpop.f32.mrb[0].mxu0
        %2383 = vdwg.mxu0
        %v2385 = vsel %vm2092, %v2132, 0
        %2387 = vmatprep.subr.mxu0 0.0
        %2388 = vmatpush1.msra.mxu0 %v1478
        %2389 = vmatprep.subr.mxu0 0.0
        %2390 = vmatpush1.msra.mxu0 0.0
        %2391 = vmatprep.subr.mxu0 0.0
        %2392 = vmatpush1.msra.mxu0 0.0
        %2393 = vmatprep.subr.mxu0 0.0
        %2394 = vmatpush1.msra.mxu0 0.0
        %2395 = vmatprep.subr.mxu0 0.0
        %2396 = vmatpush1.msra.mxu0 0.0
        %2397 = vmatprep.subr.mxu0 0.0
        %2398 = vmatpush1.msra.mxu0 0.0
        %2399 = vmatprep.subr.mxu0 0.0
        %2400 = vmatpush1.msra.mxu0 0.0
        %2401 = vmatprep.subr.mxu0 0.0
        %2402 = vmatpush1.msra.mxu0 0.0
        %2403 = vmatprep.subr.mxu0 0.0
        %2404 = vmatpush1.msra.mxu0 0.0
        %2405 = vmatprep.subr.mxu0 0.0
        %2406 = vmatpush1.msra.mxu0 0.0
        %2407 = vmatprep.subr.mxu0 0.0
        %2408 = vmatpush1.msra.mxu0 0.0
        %2409 = vmatprep.subr.mxu0 0.0
        %2410 = vmatpush1.msra.mxu0 0.0
        %2411 = vmatprep.subr.mxu0 0.0
        %2412 = vmatpush1.msra.mxu0 0.0
        %2413 = vmatprep.subr.mxu0 0.0
        %2414 = vmatpush1.msra.mxu0 0.0
        %2415 = vmatprep.subr.mxu0 0.0
        %2416 = vmatpush1.msra.mxu0 0.0
        %2417 = vmatprep.subr.mxu0 0.0
        %2418 = vmatpush1.msra.mxu0 0.0
        %2419 = vmatprep.subr.mxu0 0.0
        %2420 = vmatpush1.msra.mxu0 0.0
        %2421 = vmatprep.subr.mxu0 0.0
        %2422 = vmatpush1.msra.mxu0 0.0
        %2423 = vmatprep.subr.mxu0 0.0
        %2424 = vmatpush1.msra.mxu0 0.0
        %2425 = vmatprep.subr.mxu0 0.0
        %2426 = vmatpush1.msra.mxu0 0.0
        %2427 = vmatprep.subr.mxu0 0.0
        %2428 = vmatpush1.msra.mxu0 0.0
        %2429 = vmatprep.subr.mxu0 0.0
        %2430 = vmatpush1.msra.mxu0 0.0
        %2431 = vmatprep.subr.mxu0 0.0
        %2432 = vmatpush1.msra.mxu0 0.0
        %2433 = vmatprep.subr.mxu0 0.0
        %2434 = vmatpush1.msra.mxu0 0.0
        %2435 = vmatprep.subr.mxu0 0.0
        %2436 = vmatpush1.msra.mxu0 0.0
        %2437 = vmatprep.subr.mxu0 0.0
        %2438 = vmatpush1.msra.mxu0 0.0
        %2439 = vmatprep.subr.mxu0 0.0
        %2440 = vmatpush1.msra.mxu0 0.0
        %2441 = vmatprep.subr.mxu0 0.0
        %2442 = vmatpush1.msra.mxu0 0.0
        %2443 = vmatprep.subr.mxu0 0.0
        %2444 = vmatpush1.msra.mxu0 0.0
        %2445 = vmatprep.subr.mxu0 0.0
        %2446 = vmatpush1.msra.mxu0 0.0
        %2447 = vmatprep.subr.mxu0 0.0
        %2448 = vmatpush1.msra.mxu0 0.0
        %2449 = vmatprep.subr.mxu0 0.0
        %2450 = vmatpush1.msra.mxu0 0.0
        %2451 = vmatprep.mubr.f32.mxu0 0.0
        %2452 = vmatmul.mubr.f32.gmra.mrb[0].mxu0 %v2385
        %v2453 = vpop.f32.mrb[0].mxu0
        %v2454 = vadd.f32 0.0, %v2453
        %v2455 = vpop.f32.mrb[0].mxu0
        %2456 = vdwg.mxu0
        %v2458 = vsel %vm2092, %v2134, 0
        %2460 = vmatprep.subr.mxu0 0.0
        %2461 = vmatpush1.msra.mxu0 %v1479
        %2462 = vmatprep.subr.mxu0 0.0
        %2463 = vmatpush1.msra.mxu0 0.0
        %2464 = vmatprep.subr.mxu0 0.0
        %2465 = vmatpush1.msra.mxu0 0.0
        %2466 = vmatprep.subr.mxu0 0.0
        %2467 = vmatpush1.msra.mxu0 0.0
        %2468 = vmatprep.subr.mxu0 0.0
        %2469 = vmatpush1.msra.mxu0 0.0
        %2470 = vmatprep.subr.mxu0 0.0
        %2471 = vmatpush1.msra.mxu0 0.0
        %2472 = vmatprep.subr.mxu0 0.0
        %2473 = vmatpush1.msra.mxu0 0.0
        %2474 = vmatprep.subr.mxu0 0.0
        %2475 = vmatpush1.msra.mxu0 0.0
        %2476 = vmatprep.subr.mxu0 0.0
        %2477 = vmatpush1.msra.mxu0 0.0
        %2478 = vmatprep.subr.mxu0 0.0
        %2479 = vmatpush1.msra.mxu0 0.0
        %2480 = vmatprep.subr.mxu0 0.0
        %2481 = vmatpush1.msra.mxu0 0.0
        %2482 = vmatprep.subr.mxu0 0.0
        %2483 = vmatpush1.msra.mxu0 0.0
        %2484 = vmatprep.subr.mxu0 0.0
        %2485 = vmatpush1.msra.mxu0 0.0
        %2486 = vmatprep.subr.mxu0 0.0
        %2487 = vmatpush1.msra.mxu0 0.0
        %2488 = vmatprep.subr.mxu0 0.0
        %2489 = vmatpush1.msra.mxu0 0.0
        %2490 = vmatprep.subr.mxu0 0.0
        %2491 = vmatpush1.msra.mxu0 0.0
        %2492 = vmatprep.subr.mxu0 0.0
        %2493 = vmatpush1.msra.mxu0 0.0
        %2494 = vmatprep.subr.mxu0 0.0
        %2495 = vmatpush1.msra.mxu0 0.0
        %2496 = vmatprep.subr.mxu0 0.0
        %2497 = vmatpush1.msra.mxu0 0.0
        %2498 = vmatprep.subr.mxu0 0.0
        %2499 = vmatpush1.msra.mxu0 0.0
        %2500 = vmatprep.subr.mxu0 0.0
        %2501 = vmatpush1.msra.mxu0 0.0
        %2502 = vmatprep.subr.mxu0 0.0
        %2503 = vmatpush1.msra.mxu0 0.0
        %2504 = vmatprep.subr.mxu0 0.0
        %2505 = vmatpush1.msra.mxu0 0.0
        %2506 = vmatprep.subr.mxu0 0.0
        %2507 = vmatpush1.msra.mxu0 0.0
        %2508 = vmatprep.subr.mxu0 0.0
        %2509 = vmatpush1.msra.mxu0 0.0
        %2510 = vmatprep.subr.mxu0 0.0
        %2511 = vmatpush1.msra.mxu0 0.0
        %2512 = vmatprep.subr.mxu0 0.0
        %2513 = vmatpush1.msra.mxu0 0.0
        %2514 = vmatprep.subr.mxu0 0.0
        %2515 = vmatpush1.msra.mxu0 0.0
        %2516 = vmatprep.subr.mxu0 0.0
        %2517 = vmatpush1.msra.mxu0 0.0
        %2518 = vmatprep.subr.mxu0 0.0
        %2519 = vmatpush1.msra.mxu0 0.0
        %2520 = vmatprep.subr.mxu0 0.0
        %2521 = vmatpush1.msra.mxu0 0.0
        %2522 = vmatprep.subr.mxu0 0.0
        %2523 = vmatpush1.msra.mxu0 0.0
        %2524 = vmatprep.mubr.f32.mxu0 0.0
        %2525 = vmatmul.mubr.f32.gmra.mrb[0].mxu0 %v2458
        %v2526 = vpop.f32.mrb[0].mxu0
        %v2527 = vadd.f32 0.0, %v2526
        %v2528 = vpop.f32.mrb[0].mxu0
        %2529 = vdwg.mxu0
        %v2531 = vsel %vm2092, %v2136, 0
        %2533 = vmatprep.subr.mxu0 0.0
        %2534 = vmatpush1.msra.mxu0 %v1480
        %2535 = vmatprep.subr.mxu0 0.0
        %2536 = vmatpush1.msra.mxu0 0.0
        %2537 = vmatprep.subr.mxu0 0.0
        %2538 = vmatpush1.msra.mxu0 0.0
        %2539 = vmatprep.subr.mxu0 0.0
        %2540 = vmatpush1.msra.mxu0 0.0
        %2541 = vmatprep.subr.mxu0 0.0
        %2542 = vmatpush1.msra.mxu0 0.0
        %2543 = vmatprep.subr.mxu0 0.0
        %2544 = vmatpush1.msra.mxu0 0.0
        %2545 = vmatprep.subr.mxu0 0.0
        %2546 = vmatpush1.msra.mxu0 0.0
        %2547 = vmatprep.subr.mxu0 0.0
        %2548 = vmatpush1.msra.mxu0 0.0
        %2549 = vmatprep.subr.mxu0 0.0
        %2550 = vmatpush1.msra.mxu0 0.0
        %2551 = vmatprep.subr.mxu0 0.0
        %2552 = vmatpush1.msra.mxu0 0.0
        %2553 = vmatprep.subr.mxu0 0.0
        %2554 = vmatpush1.msra.mxu0 0.0
        %2555 = vmatprep.subr.mxu0 0.0
        %2556 = vmatpush1.msra.mxu0 0.0
        %2557 = vmatprep.subr.mxu0 0.0
        %2558 = vmatpush1.msra.mxu0 0.0
        %2559 = vmatprep.subr.mxu0 0.0
        %2560 = vmatpush1.msra.mxu0 0.0
        %2561 = vmatprep.subr.mxu0 0.0
        %2562 = vmatpush1.msra.mxu0 0.0
        %2563 = vmatprep.subr.mxu0 0.0
        %2564 = vmatpush1.msra.mxu0 0.0
        %2565 = vmatprep.subr.mxu0 0.0
        %2566 = vmatpush1.msra.mxu0 0.0
        %2567 = vmatprep.subr.mxu0 0.0
        %2568 = vmatpush1.msra.mxu0 0.0
        %2569 = vmatprep.subr.mxu0 0.0
        %2570 = vmatpush1.msra.mxu0 0.0
        %2571 = vmatprep.subr.mxu0 0.0
        %2572 = vmatpush1.msra.mxu0 0.0
        %2573 = vmatprep.subr.mxu0 0.0
        %2574 = vmatpush1.msra.mxu0 0.0
        %2575 = vmatprep.subr.mxu0 0.0
        %2576 = vmatpush1.msra.mxu0 0.0
        %2577 = vmatprep.subr.mxu0 0.0
        %2578 = vmatpush1.msra.mxu0 0.0
        %2579 = vmatprep.subr.mxu0 0.0
        %2580 = vmatpush1.msra.mxu0 0.0
        %2581 = vmatprep.subr.mxu0 0.0
        %2582 = vmatpush1.msra.mxu0 0.0
        %2583 = vmatprep.subr.mxu0 0.0
        %2584 = vmatpush1.msra.mxu0 0.0
        %2585 = vmatprep.subr.mxu0 0.0
        %2586 = vmatpush1.msra.mxu0 0.0
        %2587 = vmatprep.subr.mxu0 0.0
        %2588 = vmatpush1.msra.mxu0 0.0
        %2589 = vmatprep.subr.mxu0 0.0
        %2590 = vmatpush1.msra.mxu0 0.0
        %2591 = vmatprep.subr.mxu0 0.0
        %2592 = vmatpush1.msra.mxu0 0.0
        %2593 = vmatprep.subr.mxu0 0.0
        %2594 = vmatpush1.msra.mxu0 0.0
        %2595 = vmatprep.subr.mxu0 0.0
        %2596 = vmatpush1.msra.mxu0 0.0
        %2597 = vmatprep.mubr.f32.mxu0 0.0
        %2598 = vmatmul.mubr.f32.gmra.mrb[0].mxu0 %v2531
        %v2599 = vpop.f32.mrb[0].mxu0
        %v2600 = vadd.f32 0.0, %v2599
        %v2601 = vpop.f32.mrb[0].mxu0
        %2602 = vdwg.mxu0
        %v2604 = vsel %vm2092, %v2138, 0
        %2606 = vmatprep.subr.mxu0 0.0
        %2607 = vmatpush1.msra.mxu0 %v1481
        %2608 = vmatprep.subr.mxu0 0.0
        %2609 = vmatpush1.msra.mxu0 0.0
        %2610 = vmatprep.subr.mxu0 0.0
        %2611 = vmatpush1.msra.mxu0 0.0
        %2612 = vmatprep.subr.mxu0 0.0
        %2613 = vmatpush1.msra.mxu0 0.0
        %2614 = vmatprep.subr.mxu0 0.0
        %2615 = vmatpush1.msra.mxu0 0.0
        %2616 = vmatprep.subr.mxu0 0.0
        %2617 = vmatpush1.msra.mxu0 0.0
        %2618 = vmatprep.subr.mxu0 0.0
        %2619 = vmatpush1.msra.mxu0 0.0
        %2620 = vmatprep.subr.mxu0 0.0
        %2621 = vmatpush1.msra.mxu0 0.0
        %2622 = vmatprep.subr.mxu0 0.0
        %2623 = vmatpush1.msra.mxu0 0.0
        %2624 = vmatprep.subr.mxu0 0.0
        %2625 = vmatpush1.msra.mxu0 0.0
        %2626 = vmatprep.subr.mxu0 0.0
        %2627 = vmatpush1.msra.mxu0 0.0
        %2628 = vmatprep.subr.mxu0 0.0
        %2629 = vmatpush1.msra.mxu0 0.0
        %2630 = vmatprep.subr.mxu0 0.0
        %2631 = vmatpush1.msra.mxu0 0.0
        %2632 = vmatprep.subr.mxu0 0.0
        %2633 = vmatpush1.msra.mxu0 0.0
        %2634 = vmatprep.subr.mxu0 0.0
        %2635 = vmatpush1.msra.mxu0 0.0
        %2636 = vmatprep.subr.mxu0 0.0
        %2637 = vmatpush1.msra.mxu0 0.0
        %2638 = vmatprep.subr.mxu0 0.0
        %2639 = vmatpush1.msra.mxu0 0.0
        %2640 = vmatprep.subr.mxu0 0.0
        %2641 = vmatpush1.msra.mxu0 0.0
        %2642 = vmatprep.subr.mxu0 0.0
        %2643 = vmatpush1.msra.mxu0 0.0
        %2644 = vmatprep.subr.mxu0 0.0
        %2645 = vmatpush1.msra.mxu0 0.0
        %2646 = vmatprep.subr.mxu0 0.0
        %2647 = vmatpush1.msra.mxu0 0.0
        %2648 = vmatprep.subr.mxu0 0.0
        %2649 = vmatpush1.msra.mxu0 0.0
        %2650 = vmatprep.subr.mxu0 0.0
        %2651 = vmatpush1.msra.mxu0 0.0
        %2652 = vmatprep.subr.mxu0 0.0
        %2653 = vmatpush1.msra.mxu0 0.0
        %2654 = vmatprep.subr.mxu0 0.0
        %2655 = vmatpush1.msra.mxu0 0.0
        %2656 = vmatprep.subr.mxu0 0.0
        %2657 = vmatpush1.msra.mxu0 0.0
        %2658 = vmatprep.subr.mxu0 0.0
        %2659 = vmatpush1.msra.mxu0 0.0
        %2660 = vmatprep.subr.mxu0 0.0
        %2661 = vmatpush1.msra.mxu0 0.0
        %2662 = vmatprep.subr.mxu0 0.0
        %2663 = vmatpush1.msra.mxu0 0.0
        %2664 = vmatprep.subr.mxu0 0.0
        %2665 = vmatpush1.msra.mxu0 0.0
        %2666 = vmatprep.subr.mxu0 0.0
        %2667 = vmatpush1.msra.mxu0 0.0
        %2668 = vmatprep.subr.mxu0 0.0
        %2669 = vmatpush1.msra.mxu0 0.0
        %2670 = vmatprep.mubr.f32.mxu0 0.0
        %2671 = vmatmul.mubr.f32.gmra.mrb[0].mxu0 %v2604
        %v2672 = vpop.f32.mrb[0].mxu0
        %v2673 = vadd.f32 0.0, %v2672
        %v2674 = vpop.f32.mrb[0].mxu0
        %2675 = vdwg.mxu0
        %v2677 = vsel %vm2092, %v2140, 0
        %2679 = vmatprep.subr.mxu0 0.0
        %2680 = vmatpush1.msra.mxu0 %v1482
        %2681 = vmatprep.subr.mxu0 0.0
        %2682 = vmatpush1.msra.mxu0 0.0
        %2683 = vmatprep.subr.mxu0 0.0
        %2684 = vmatpush1.msra.mxu0 0.0
        %2685 = vmatprep.subr.mxu0 0.0
        %2686 = vmatpush1.msra.mxu0 0.0
        %2687 = vmatprep.subr.mxu0 0.0
        %2688 = vmatpush1.msra.mxu0 0.0
        %2689 = vmatprep.subr.mxu0 0.0
        %2690 = vmatpush1.msra.mxu0 0.0
        %2691 = vmatprep.subr.mxu0 0.0
        %2692 = vmatpush1.msra.mxu0 0.0
        %2693 = vmatprep.subr.mxu0 0.0
        %2694 = vmatpush1.msra.mxu0 0.0
        %2695 = vmatprep.subr.mxu0 0.0
        %2696 = vmatpush1.msra.mxu0 0.0
        %2697 = vmatprep.subr.mxu0 0.0
        %2698 = vmatpush1.msra.mxu0 0.0
        %2699 = vmatprep.subr.mxu0 0.0
        %2700 = vmatpush1.msra.mxu0 0.0
        %2701 = vmatprep.subr.mxu0 0.0
        %2702 = vmatpush1.msra.mxu0 0.0
        %2703 = vmatprep.subr.mxu0 0.0
        %2704 = vmatpush1.msra.mxu0 0.0
        %2705 = vmatprep.subr.mxu0 0.0
        %2706 = vmatpush1.msra.mxu0 0.0
        %2707 = vmatprep.subr.mxu0 0.0
        %2708 = vmatpush1.msra.mxu0 0.0
        %2709 = vmatprep.subr.mxu0 0.0
        %2710 = vmatpush1.msra.mxu0 0.0
        %2711 = vmatprep.subr.mxu0 0.0
        %2712 = vmatpush1.msra.mxu0 0.0
        %2713 = vmatprep.subr.mxu0 0.0
        %2714 = vmatpush1.msra.mxu0 0.0
        %2715 = vmatprep.subr.mxu0 0.0
        %2716 = vmatpush1.msra.mxu0 0.0
        %2717 = vmatprep.subr.mxu0 0.0
        %2718 = vmatpush1.msra.mxu0 0.0
        %2719 = vmatprep.subr.mxu0 0.0
        %2720 = vmatpush1.msra.mxu0 0.0
        %2721 = vmatprep.subr.mxu0 0.0
        %2722 = vmatpush1.msra.mxu0 0.0
        %2723 = vmatprep.subr.mxu0 0.0
        %2724 = vmatpush1.msra.mxu0 0.0
        %2725 = vmatprep.subr.mxu0 0.0
        %2726 = vmatpush1.msra.mxu0 0.0
        %2727 = vmatprep.subr.mxu0 0.0
        %2728 = vmatpush1.msra.mxu0 0.0
        %2729 = vmatprep.subr.mxu0 0.0
        %2730 = vmatpush1.msra.mxu0 0.0
        %2731 = vmatprep.subr.mxu0 0.0
        %2732 = vmatpush1.msra.mxu0 0.0
        %2733 = vmatprep.subr.mxu0 0.0
        %2734 = vmatpush1.msra.mxu0 0.0
        %2735 = vmatprep.subr.mxu0 0.0
        %2736 = vmatpush1.msra.mxu0 0.0
        %2737 = vmatprep.subr.mxu0 0.0
        %2738 = vmatpush1.msra.mxu0 0.0
        %2739 = vmatprep.subr.mxu0 0.0
        %2740 = vmatpush1.msra.mxu0 0.0
        %2741 = vmatprep.subr.mxu0 0.0
        %2742 = vmatpush1.msra.mxu0 0.0
        %2743 = vmatprep.mubr.f32.mxu0 0.0
        %2744 = vmatmul.mubr.f32.gmra.mrb[0].mxu0 %v2677
        %v2745 = vpop.f32.mrb[0].mxu0
        %v2746 = vadd.f32 0.0, %v2745
        %v2747 = vpop.f32.mrb[0].mxu0
        %2748 = vdwg.mxu0
        %v2749 = vrcp.pop %v2143
        %v2750 = vrcp.pop %v2146
        %v2751 = vrcp.pop %v2149
        %v2752 = vrcp.pop %v2152
        %v2753 = vrcp.pop %v2155
        %v2754 = vrcp.pop %v2158
        %v2755 = vrcp.pop %v2161
        %v2756 = vrcp.pop %v2164
        %v2757 = vmul.f32 %v2235, %v2749
        %v2758 = vmul.f32 %v2308, %v2750
        %v2759 = vmul.f32 %v2381, %v2751
        %v2760 = vmul.f32 %v2454, %v2752
        %v2761 = vmul.f32 %v2527, %v2753
        %v2762 = vmul.f32 %v2600, %v2754
        %v2763 = vmul.f32 %v2673, %v2755
        %v2764 = vmul.f32 %v2746, %v2756
        %v2765 = vcombine.low %v2757, %v2759
        %v2766 = vcombine.high %v2757, %v2759
        %v2768 = vunpack.c.l.s4 1983009808
        %v2769 = vunpack.c.0.s8 %v2768
        %v2770 = vlaneseq
        %v2771 = vshrl.u32 %v2770, 7
        %v2772 = vsub.s32 %v2769, %v2771
        %v2773 = vrot.slane %v2765, %v2772
        %v2775 = vunpack.c.l.s4 1983009808
        %v2776 = vunpack.c.0.s8 %v2775
        %v2777 = vlaneseq
        %v2778 = vshrl.u32 %v2777, 7
        %v2779 = vsub.s32 %v2776, %v2778
        %v2780 = vrot.slane %v2766, %v2779
        %v2781 = vcombine.low %v2758, %v2760
        %v2782 = vcombine.high %v2758, %v2760
        %v2784 = vunpack.c.l.s4 1983009808
        %v2785 = vunpack.c.0.s8 %v2784
        %v2786 = vlaneseq
        %v2787 = vshrl.u32 %v2786, 7
        %v2788 = vsub.s32 %v2785, %v2787
        %v2789 = vrot.slane %v2781, %v2788
        %v2791 = vunpack.c.l.s4 1983009808
        %v2792 = vunpack.c.0.s8 %v2791
        %v2793 = vlaneseq
        %v2794 = vshrl.u32 %v2793, 7
        %v2795 = vsub.s32 %v2792, %v2794
        %v2796 = vrot.slane %v2782, %v2795
        %v2797 = vcombine.low %v2761, %v2763
        %v2798 = vcombine.high %v2761, %v2763
        %v2800 = vunpack.c.l.s4 1983009808
        %v2801 = vunpack.c.0.s8 %v2800
        %v2802 = vlaneseq
        %v2803 = vshrl.u32 %v2802, 7
        %v2804 = vsub.s32 %v2801, %v2803
        %v2805 = vrot.slane %v2797, %v2804
        %v2807 = vunpack.c.l.s4 1983009808
        %v2808 = vunpack.c.0.s8 %v2807
        %v2809 = vlaneseq
        %v2810 = vshrl.u32 %v2809, 7
        %v2811 = vsub.s32 %v2808, %v2810
        %v2812 = vrot.slane %v2798, %v2811
        %v2813 = vcombine.low %v2762, %v2764
        %v2814 = vcombine.high %v2762, %v2764
        %v2816 = vunpack.c.l.s4 1983009808
        %v2817 = vunpack.c.0.s8 %v2816
        %v2818 = vlaneseq
        %v2819 = vshrl.u32 %v2818, 7
        %v2820 = vsub.s32 %v2817, %v2819
        %v2821 = vrot.slane %v2813, %v2820
        %v2823 = vunpack.c.l.s4 1983009808
        %v2824 = vunpack.c.0.s8 %v2823
        %v2825 = vlaneseq
        %v2826 = vshrl.u32 %v2825, 7
        %v2827 = vsub.s32 %v2824, %v2826
        %v2828 = vrot.slane %v2814, %v2827
        %v2829 = vcombine.low %v2773, %v2789
        %v2830 = vcombine.high %v2773, %v2789
        %v2832 = vunpack.c.l.s4 1934713408
        %v2833 = vunpack.c.0.s8 %v2832
        %v2834 = vlaneseq
        %v2835 = vshrl.u32 %v2834, 7
        %v2836 = vsub.s32 %v2833, %v2835
        %v2837 = vrot.slane %v2829, %v2836
        %v2839 = vunpack.c.l.s4 1934713408
        %v2840 = vunpack.c.0.s8 %v2839
        %v2841 = vlaneseq
        %v2842 = vshrl.u32 %v2841, 7
        %v2843 = vsub.s32 %v2840, %v2842
        %v2844 = vrot.slane %v2830, %v2843
        %v2845 = vcombine.low %v2780, %v2796
        %v2846 = vcombine.high %v2780, %v2796
        %v2848 = vunpack.c.l.s4 1934713408
        %v2849 = vunpack.c.0.s8 %v2848
        %v2850 = vlaneseq
        %v2851 = vshrl.u32 %v2850, 7
        %v2852 = vsub.s32 %v2849, %v2851
        %v2853 = vrot.slane %v2845, %v2852
        %v2855 = vunpack.c.l.s4 1934713408
        %v2856 = vunpack.c.0.s8 %v2855
        %v2857 = vlaneseq
        %v2858 = vshrl.u32 %v2857, 7
        %v2859 = vsub.s32 %v2856, %v2858
        %v2860 = vrot.slane %v2846, %v2859
        %v2861 = vcombine.low %v2805, %v2821
        %v2862 = vcombine.high %v2805, %v2821
        %v2864 = vunpack.c.l.s4 1934713408
        %v2865 = vunpack.c.0.s8 %v2864
        %v2866 = vlaneseq
        %v2867 = vshrl.u32 %v2866, 7
        %v2868 = vsub.s32 %v2865, %v2867
        %v2869 = vrot.slane %v2861, %v2868
        %v2871 = vunpack.c.l.s4 1934713408
        %v2872 = vunpack.c.0.s8 %v2871
        %v2873 = vlaneseq
        %v2874 = vshrl.u32 %v2873, 7
        %v2875 = vsub.s32 %v2872, %v2874
        %v2876 = vrot.slane %v2862, %v2875
        %v2877 = vcombine.low %v2812, %v2828
        %v2878 = vcombine.high %v2812, %v2828
        %v2880 = vunpack.c.l.s4 1934713408
        %v2881 = vunpack.c.0.s8 %v2880
        %v2882 = vlaneseq
        %v2883 = vshrl.u32 %v2882, 7
        %v2884 = vsub.s32 %v2881, %v2883
        %v2885 = vrot.slane %v2877, %v2884
        %v2887 = vunpack.c.l.s4 1934713408
        %v2888 = vunpack.c.0.s8 %v2887
        %v2889 = vlaneseq
        %v2890 = vshrl.u32 %v2889, 7
        %v2891 = vsub.s32 %v2888, %v2890
        %v2892 = vrot.slane %v2878, %v2891
        %v2893 = vcombine.low %v2837, %v2869
        %v2894 = vcombine.high %v2837, %v2869
        %v2895 = vcombine.low %v2844, %v2876
        %v2896 = vcombine.high %v2844, %v2876
        %v2897 = vcombine.low %v2853, %v2885
        %v2898 = vcombine.high %v2853, %v2885
        %v2899 = vcombine.low %v2860, %v2892
        %v2900 = vcombine.high %v2860, %v2892
        %v2901 = vcombine.low %v2893, %v2895
        %v2902 = vcombine.high %v2893, %v2895
        %v2904 = vunpack.c.l.s4 1983009808
        %v2905 = vunpack.c.0.s8 %v2904
        %v2906 = vlaneseq
        %v2907 = vshrl.u32 %v2906, 7
        %v2908 = vsub.s32 %v2905, %v2907
        %v2909 = vrot.slane %v2901, %v2908
        %v2911 = vunpack.c.l.s4 1983009808
        %v2912 = vunpack.c.0.s8 %v2911
        %v2913 = vlaneseq
        %v2914 = vshrl.u32 %v2913, 7
        %v2915 = vsub.s32 %v2912, %v2914
        %v2916 = vrot.slane %v2902, %v2915
        %v2917 = vcombine.low %v2894, %v2896
        %v2918 = vcombine.high %v2894, %v2896
        %v2920 = vunpack.c.l.s4 1983009808
        %v2921 = vunpack.c.0.s8 %v2920
        %v2922 = vlaneseq
        %v2923 = vshrl.u32 %v2922, 7
        %v2924 = vsub.s32 %v2921, %v2923
        %v2925 = vrot.slane %v2917, %v2924
        %v2927 = vunpack.c.l.s4 1983009808
        %v2928 = vunpack.c.0.s8 %v2927
        %v2929 = vlaneseq
        %v2930 = vshrl.u32 %v2929, 7
        %v2931 = vsub.s32 %v2928, %v2930
        %v2932 = vrot.slane %v2918, %v2931
        %v2933 = vcombine.low %v2897, %v2899
        %v2934 = vcombine.high %v2897, %v2899
        %v2936 = vunpack.c.l.s4 1983009808
        %v2937 = vunpack.c.0.s8 %v2936
        %v2938 = vlaneseq
        %v2939 = vshrl.u32 %v2938, 7
        %v2940 = vsub.s32 %v2937, %v2939
        %v2941 = vrot.slane %v2933, %v2940
        %v2943 = vunpack.c.l.s4 1983009808
        %v2944 = vunpack.c.0.s8 %v2943
        %v2945 = vlaneseq
        %v2946 = vshrl.u32 %v2945, 7
        %v2947 = vsub.s32 %v2944, %v2946
        %v2948 = vrot.slane %v2934, %v2947
        %v2949 = vcombine.low %v2898, %v2900
        %v2950 = vcombine.high %v2898, %v2900
        %v2952 = vunpack.c.l.s4 1983009808
        %v2953 = vunpack.c.0.s8 %v2952
        %v2954 = vlaneseq
        %v2955 = vshrl.u32 %v2954, 7
        %v2956 = vsub.s32 %v2953, %v2955
        %v2957 = vrot.slane %v2949, %v2956
        %v2959 = vunpack.c.l.s4 1983009808
        %v2960 = vunpack.c.0.s8 %v2959
        %v2961 = vlaneseq
        %v2962 = vshrl.u32 %v2961, 7
        %v2963 = vsub.s32 %v2960, %v2962
        %v2964 = vrot.slane %v2950, %v2963
        %v2965 = vcombine.low %v2909, %v2925
        %v2966 = vcombine.high %v2909, %v2925
        %v2968 = vunpack.c.l.s4 1934713408
        %v2969 = vunpack.c.0.s8 %v2968
        %v2970 = vlaneseq
        %v2971 = vshrl.u32 %v2970, 7
        %v2972 = vsub.s32 %v2969, %v2971
        %v2973 = vrot.slane %v2965, %v2972
        %v2975 = vunpack.c.l.s4 1934713408
        %v2976 = vunpack.c.0.s8 %v2975
        %v2977 = vlaneseq
        %v2978 = vshrl.u32 %v2977, 7
        %v2979 = vsub.s32 %v2976, %v2978
        %v2980 = vrot.slane %v2966, %v2979
        %v2981 = vcombine.low %v2916, %v2932
        %v2982 = vcombine.high %v2916, %v2932
        %v2984 = vunpack.c.l.s4 1934713408
        %v2985 = vunpack.c.0.s8 %v2984
        %v2986 = vlaneseq
        %v2987 = vshrl.u32 %v2986, 7
        %v2988 = vsub.s32 %v2985, %v2987
        %v2989 = vrot.slane %v2981, %v2988
        %v2991 = vunpack.c.l.s4 1934713408
        %v2992 = vunpack.c.0.s8 %v2991
        %v2993 = vlaneseq
        %v2994 = vshrl.u32 %v2993, 7
        %v2995 = vsub.s32 %v2992, %v2994
        %v2996 = vrot.slane %v2982, %v2995
        %v2997 = vcombine.low %v2941, %v2957
        %v2998 = vcombine.high %v2941, %v2957
        %v3000 = vunpack.c.l.s4 1934713408
        %v3001 = vunpack.c.0.s8 %v3000
        %v3002 = vlaneseq
        %v3003 = vshrl.u32 %v3002, 7
        %v3004 = vsub.s32 %v3001, %v3003
        %v3005 = vrot.slane %v2997, %v3004
        %v3007 = vunpack.c.l.s4 1934713408
        %v3008 = vunpack.c.0.s8 %v3007
        %v3009 = vlaneseq
        %v3010 = vshrl.u32 %v3009, 7
        %v3011 = vsub.s32 %v3008, %v3010
        %v3012 = vrot.slane %v2998, %v3011
        %v3013 = vcombine.low %v2948, %v2964
        %v3014 = vcombine.high %v2948, %v2964
        %v3016 = vunpack.c.l.s4 1934713408
        %v3017 = vunpack.c.0.s8 %v3016
        %v3018 = vlaneseq
        %v3019 = vshrl.u32 %v3018, 7
        %v3020 = vsub.s32 %v3017, %v3019
        %v3021 = vrot.slane %v3013, %v3020
        %v3023 = vunpack.c.l.s4 1934713408
        %v3024 = vunpack.c.0.s8 %v3023
        %v3025 = vlaneseq
        %v3026 = vshrl.u32 %v3025, 7
        %v3027 = vsub.s32 %v3024, %v3026
        %v3028 = vrot.slane %v3014, %v3027
        %v3029 = vcombine.low %v2973, %v3005
        %v3030 = vcombine.high %v2973, %v3005
        %v3031 = vcombine.low %v2980, %v3012
        %v3032 = vcombine.high %v2980, %v3012
        %v3033 = vcombine.low %v2989, %v3021
        %v3034 = vcombine.high %v2989, %v3021
        %v3035 = vcombine.low %v2996, %v3028
        %v3036 = vcombine.high %v2996, %v3028
        %3038 = vrot.lane.b32.xlu0 %v3030, 4
        %v3039 = vpop.permute.xlu0 %3038
        %3042 = vrot.lane.b32.xlu0 %v3031, 8
        %v3043 = vpop.permute.xlu0 %3042
        %3046 = vrot.lane.b32.xlu0 %v3032, 12
        %v3047 = vpop.permute.xlu0 %3046
        %3050 = vrot.lane.b32.xlu0 %v3033, 16
        %v3051 = vpop.permute.xlu0 %3050
        %3054 = vrot.lane.b32.xlu0 %v3034, 20
        %v3055 = vpop.permute.xlu0 %3054
        %3058 = vrot.lane.b32.xlu0 %v3035, 24
        %v3059 = vpop.permute.xlu0 %3058
        %3062 = vrot.lane.b32.xlu0 %v3036, 28
        %v3063 = vpop.permute.xlu0 %3062
        %v3065 = vsel %vm1483, %v3029, %v3039
        %v3066 = vsel %vm2092, %v3065, %v3043
        %vm3067 = vcmask 97280
        %v3068 = vsel %vm3067, %v3066, %v3047
        %vm3069 = vcmask 130048
        %v3070 = vsel %vm3069, %v3068, %v3051
        %vm3071 = vcmask 162816
        %v3072 = vsel %vm3071, %v3070, %v3055
        %vm3073 = vcmask 195584
        %v3074 = vsel %vm3073, %v3072, %v3059
        %vm3075 = vcmask 228352
        %v3076 = vsel %vm3075, %v3074, %v3063
        %v3077 = vld [vmem:[#allocation14] sm:$0xff]
        %v3078 = vld [vmem:[#allocation14 + $0x8] sm:$0xff]
        %v3079 = vld [vmem:[#allocation14 + $0x10] sm:$0xff]
        %v3080 = vld [vmem:[#allocation14 + $0x18] sm:$0xff]
        %v3081 = vld [vmem:[%s7] sm:$0x1]
        %v3083 = vlaneseq
        %v3084 = vshrl.u32 %v3083, 7
        %v3085 = vsub.s32 0, %v3084
        %v3086 = vrot.slane %v3081, %v3085
        %v3089 = vsel %vm440, %v3076, 0
        %3091 = vmatprep.subr.mxu0 0.0
        %3092 = vmatpush1.msra.mxu0 %v3077
        %3093 = vmatprep.subr.mxu0 0.0
        %3094 = vmatpush1.msra.mxu0 %v3078
        %3095 = vmatprep.subr.mxu0 0.0
        %3096 = vmatpush1.msra.mxu0 %v3079
        %3097 = vmatprep.subr.mxu0 0.0
        %3098 = vmatpush1.msra.mxu0 %v3080
        %3099 = vmatprep.subr.mxu0 0.0
        %3100 = vmatpush1.msra.mxu0 0.0
        %3101 = vmatprep.subr.mxu0 0.0
        %3102 = vmatpush1.msra.mxu0 0.0
        %3103 = vmatprep.subr.mxu0 0.0
        %3104 = vmatpush1.msra.mxu0 0.0
        %3105 = vmatprep.subr.mxu0 0.0
        %3106 = vmatpush1.msra.mxu0 0.0
        %3107 = vmatprep.subr.mxu0 0.0
        %3108 = vmatpush1.msra.mxu0 0.0
        %3109 = vmatprep.subr.mxu0 0.0
        %3110 = vmatpush1.msra.mxu0 0.0
        %3111 = vmatprep.subr.mxu0 0.0
        %3112 = vmatpush1.msra.mxu0 0.0
        %3113 = vmatprep.subr.mxu0 0.0
        %3114 = vmatpush1.msra.mxu0 0.0
        %3115 = vmatprep.subr.mxu0 0.0
        %3116 = vmatpush1.msra.mxu0 0.0
        %3117 = vmatprep.subr.mxu0 0.0
        %3118 = vmatpush1.msra.mxu0 0.0
        %3119 = vmatprep.subr.mxu0 0.0
        %3120 = vmatpush1.msra.mxu0 0.0
        %3121 = vmatprep.subr.mxu0 0.0
        %3122 = vmatpush1.msra.mxu0 0.0
        %3123 = vmatprep.subr.mxu0 0.0
        %3124 = vmatpush1.msra.mxu0 0.0
        %3125 = vmatprep.subr.mxu0 0.0
        %3126 = vmatpush1.msra.mxu0 0.0
        %3127 = vmatprep.subr.mxu0 0.0
        %3128 = vmatpush1.msra.mxu0 0.0
        %3129 = vmatprep.subr.mxu0 0.0
        %3130 = vmatpush1.msra.mxu0 0.0
        %3131 = vmatprep.subr.mxu0 0.0
        %3132 = vmatpush1.msra.mxu0 0.0
        %3133 = vmatprep.subr.mxu0 0.0
        %3134 = vmatpush1.msra.mxu0 0.0
        %3135 = vmatprep.subr.mxu0 0.0
        %3136 = vmatpush1.msra.mxu0 0.0
        %3137 = vmatprep.subr.mxu0 0.0
        %3138 = vmatpush1.msra.mxu0 0.0
        %3139 = vmatprep.subr.mxu0 0.0
        %3140 = vmatpush1.msra.mxu0 0.0
        %3141 = vmatprep.subr.mxu0 0.0
        %3142 = vmatpush1.msra.mxu0 0.0
        %3143 = vmatprep.subr.mxu0 0.0
        %3144 = vmatpush1.msra.mxu0 0.0
        %3145 = vmatprep.subr.mxu0 0.0
        %3146 = vmatpush1.msra.mxu0 0.0
        %3147 = vmatprep.subr.mxu0 0.0
        %3148 = vmatpush1.msra.mxu0 0.0
        %3149 = vmatprep.subr.mxu0 0.0
        %3150 = vmatpush1.msra.mxu0 0.0
        %3151 = vmatprep.subr.mxu0 0.0
        %3152 = vmatpush1.msra.mxu0 0.0
        %3153 = vmatprep.subr.mxu0 0.0
        %3154 = vmatpush1.msra.mxu0 0.0
        %3155 = vmatprep.mubr.f32.mxu0 0.0
        %3156 = vmatmul.mubr.f32.gmra.mrb[0].mxu0 %v3089
        %v3157 = vpop.f32.mrb[0].mxu0
        %v3158 = vadd.f32 %v3086, %v3157
        %v3159 = vpop.f32.mrb[0].mxu0
        %3160 = vdwg.mxu0
        %3161 = vst.msk [vmem:[%s427] sm:$0xff] %vm440, %v3158
        %s3162 = sand.u32 %s240, 1
        %s3163 = scalar_lea.sflag [#allocation8], %s3162
        %s3164 = sand.u32 %s240, 1
        %s3165 = smul.addr %s3164, 8
        %s3166 = scalar_lea.vmem [#allocation15], %s3165
        // Predicated region
        $region73: #{tpu_custom_call.1} parent=51 // pred_check
          %p3167 = pneg %p250
        $region74: #{tpu_custom_call.1} parent=51 // pred_check_branch
          %3169 = sbr.rel (%p3167) target = $region76
        $region75: #{tpu_custom_call.1} parent=51 // pred_region
          %s3171 = ssub.s32 128, 128
          %3172 = vsyncadd %s3163, %s3171
          %s3173 = sadd.s32 %s35, %s34
          %s3174 = smul.addr %s3173, 128
          %s3175 = scalar_lea.hbm %s8, %s3174
          %s3177 = sshll.u32 %s3166, 4
          %s3178 = int_to_ptr.vmem [resolvable:$true] %s3177
          %3180 = dma.vmem_to_hbm [thread:$0]  %s3178, 128, %s3175, %s3163
        $region76: #{tpu_custom_call.1} parent=51 // pred_fallthru
          _
      $region52: #{tpu_custom_call.1} parent=5 // pred_fallthru
        _
      %p3181 = scmp.le.s32.totalorder 2, %s24
      // Predicated region
      $region77: #{tpu_custom_call.1} parent=5 // pred_check
        %p3182 = pneg %p3181
      $region78: #{tpu_custom_call.1} parent=5 // pred_check_branch
        %3184 = sbr.rel (%p3182) target = $region80
      $region79: #{tpu_custom_call.1} parent=5 // pred_region
        %s3185 = ssub.s32 %s24, 2
        // Predicated region
        $region81: #{tpu_custom_call.1} parent=79 // pred_check
          %p3186 = pneg %p256
        $region82: #{tpu_custom_call.1} parent=79 // pred_check_branch
          %3188 = sbr.rel (%p3186) target = $region84
        $region83: #{tpu_custom_call.1} parent=79 // pred_region
          %s3189 = sand.u32 %s241, 1
          %s3190 = scalar_lea.sflag [#allocation8], %s3189
          %s3191 = sand.u32 %s241, 1
          %s3192 = smul.addr %s3191, 8
          %s3193 = scalar_lea.vmem [#allocation15], %s3192
          %3194 = dma.done %s3190, 128
        $region84: #{tpu_custom_call.1} parent=79 // pred_fallthru
          _
      $region80: #{tpu_custom_call.1} parent=5 // pred_fallthru
        _
    $region6: #{tpu_custom_call.1} parent=1 // loop_footer
      %s28 = sadd.s32 1, %s24
    $region7: #{tpu_custom_call.1} parent=1 // loop_footer_branch
      %23 = sbr.rel target = $region3
    $region8: #{tpu_custom_call.1} parent=1 // loop_exit
      _
    %3195 = vsyncpa [#allocation7], 1
    %s3196 = scalar_lea.sflag [#allocation7], 1
    %3197 = vsyncpa %s3196, 1
    %3198 = vsyncpa [#allocation10], 1
    %s3199 = scalar_lea.sflag [#allocation10], 1
    %3200 = vsyncpa %s3199, 1
    %3201 = vsyncpa [#allocation13], 1
    %3202 = vsyncpa [#allocation8], 1
    %s3203 = scalar_lea.sflag [#allocation8], 1
    %3204 = vsyncpa %s3203, 1

</llo_original>
